<compile_context>
chip_gen: v5e
topology: v5e:2x2
jax: 0.10.0
libtpu: 0.0.40
codegen_flags: <defaults>
</compile_context>

<pallas_src>
import functools

import jax
import jax.numpy as jnp
import numpy as np
from jax import lax
from jax.experimental import pallas as pl
from jax.experimental.pallas import tpu as pltpu


# ---------------------------------------------------------------------------
# Kernel
# ---------------------------------------------------------------------------
def _merge_embed_kernel(ee_ref, eo_ref, oe_ref, oo_ref, w_ref, b_ref, g_ref,
                        be_ref, o_ref, patch_ref, *, th, wo, cin, cout, cp,
                        eps):
    """Fused stride-2 3x3 conv + bias + LayerNorm for one (batch, row-tile).

    ee_ref : (th+1, wo+1, cin)  even padded rows (incl. +1 halo row), even cols
    eo_ref : (th+1, wo,   cin)  even padded rows (incl. +1 halo row), odd  cols
    oe_ref : (th,   wo+1, cin)  odd  padded rows, even cols
    oo_ref : (th,   wo,   cin)  odd  padded rows, odd  cols
    w_ref  : (9*cin, cp) bf16   tap-major (ki*3+kj, cin) x lane-padded Cout
    b/g/be : (1, cp) f32        conv bias / LN gamma / LN beta (zero padded)
    o_ref  : (th*wo, cp)        output block (lane-dense)
    patch_ref : (th*wo, 9*cin) bf16 VMEM scratch (per-tile im2col patch)
    """
    # --- gather the 9 conv taps into a single K = 9*cin patch --------------
    # Ref-level static slices (free views); only the sliced window is loaded.
    # (The (th, wo, cin)->(th*wo, cin) reshape is layout-free when wo is a
    #  multiple of the sublane tile; otherwise it is a VMEM-local relayout.)
    taps = (
        ee_ref[:th, :wo, :],   # (ki=0, kj=0)
        eo_ref[:th, :, :],     # (0, 1)
        ee_ref[:th, 1:, :],    # (0, 2)
        oe_ref[:, :wo, :],     # (1, 0)
        oo_ref[...],           # (1, 1)
        oe_ref[:, 1:, :],      # (1, 2)
        ee_ref[1:, :wo, :],    # (2, 0)  -> uses the halo row
        eo_ref[1:, :, :],      # (2, 1)  -> uses the halo row
        ee_ref[1:, 1:, :],     # (2, 2)  -> uses the halo row
    )
    for k, tap in enumerate(taps):
        patch_ref[:, k * cin:(k + 1) * cin] = tap.reshape(th * wo, cin)

    # --- ONE MXU matmul, f32 accumulation inside the MXU --------------------
    acc = jnp.dot(patch_ref[...], w_ref[...],
                  preferred_element_type=jnp.float32)        # (th*wo, cp) f32

    # --- bias + LayerNorm over the true `cout` channels ---------------------
    # Lanes >= cout carry zero weights/bias so acc/y are exactly 0 there, but
    # mask explicitly so the statistics are robust regardless.
    y = acc + b_ref[...]
    valid = lax.broadcasted_iota(jnp.int32, (1, cp), 1) < cout
    inv_c = jnp.float32(1.0 / cout)
    mean = jnp.sum(jnp.where(valid, y, 0.0), axis=-1, keepdims=True) * inv_c
    d = jnp.where(valid, y - mean, 0.0)          # reused for var and y_hat
    var = jnp.sum(d * d, axis=-1, keepdims=True) * inv_c
    y_hat = d * lax.rsqrt(var + eps)
    o_ref[...] = (y_hat * g_ref[...] + be_ref[...]).astype(o_ref.dtype)


# ---------------------------------------------------------------------------
# VMEM-bytes-aware tiling
# ---------------------------------------------------------------------------
def _padded_bytes(shape, dtype):
    """Bytes of a VMEM-resident array including (sublane, lane) tile padding."""
    it = np.dtype(dtype).itemsize
    sub = 8 * max(1, 4 // it)                 # 8 for f32, 16 for bf16
    dims = list(shape)
    if len(dims) >= 1:
        dims[-1] = -(-dims[-1] // 128) * 128
    if len(dims) >= 2:
        dims[-2] = -(-dims[-2] // sub) * sub
    return int(np.prod(dims)) * it


def _est_vmem_bytes(th, wo, cin, cp, cdt, odt):
    """Estimated live VMEM per grid step for row tile `th`."""
    b = 0
    # double-buffered activation inputs
    b += 2 * _padded_bytes((th + 1, wo + 1, cin), cdt)   # ee window (+halo)
    b += 2 * _padded_bytes((th + 1, wo, cin), cdt)       # eo window (+halo)
    b += 2 * _padded_bytes((th, wo + 1, cin), cdt)       # oe
    b += 2 * _padded_bytes((th, wo, cin), cdt)           # oo
    # grid-invariant operands (still double-buffered by default)
    b += 2 * _padded_bytes((9 * cin, cp), cdt)           # weights
    b += 3 * 2 * _padded_bytes((1, cp), jnp.float32)     # bias / gamma / beta
    # double-buffered output block
    b += 2 * _padded_bytes((th * wo, cp), odt)
    # im2col patch scratch (single buffer)
    b += _padded_bytes((th * wo, 9 * cin), cdt)
    # f32 matmul result + LayerNorm temporaries (headroom)
    b += 3 * _padded_bytes((th * wo, cp), jnp.float32)
    return b


def _pick_row_tile(batch, ho, wo, cin, cp, cdt, odt, budget_bytes):
    """Largest th dividing Ho that fits the VMEM budget and keeps the output
    block's second-minor dim (th*Wo) 8-aligned; prefers >= 2 grid steps."""
    cands = [t for t in range(1, ho + 1)
             if ho % t == 0 and ((t * wo) % 8 == 0 or t == ho)]
    if not cands:
        cands = [ho]
    fits = [t for t in cands
            if _est_vmem_bytes(t, wo, cin, cp, cdt, odt) <= budget_bytes]
    pool = fits if fits else cands[:1]        # best effort: smallest candidate
    multi = [t for t in pool if batch * (ho // t) >= 2]   # megacore: >=2 steps
    if multi:
        pool = multi
    return max(pool)


# ---------------------------------------------------------------------------
# Wrapper
# ---------------------------------------------------------------------------
def merge_embed(x_nchw, w_oihw, bias, gamma, beta, *, eps=1e-5,
                compute_dtype=jnp.bfloat16, out_dtype=jnp.float32):
    B, Cin, H, W = x_nchw.shape
    Cout = w_oihw.shape[0]
    kh = kw = 3
    stride, pad = 2, 1
    Ho = (H + 2 * pad - kh) // stride + 1
    Wo = (W + 2 * pad - kw) // stride + 1
    N = Ho * Wo

    # Lane-pad Cout to 128 multiples (zero weights / affine params) so output
    # stores are unmasked and the MXU N dim is full; sliced off afterwards.
    Cp = max(128, -(-Cout // 128) * 128)

    # ---- device-aware VMEM budget ----
    try:
        vmem_cap = int(pltpu.get_tpu_info().vmem_capacity_bytes)
    except Exception:
        vmem_cap = 64 * 1024 * 1024            # v7x per-core VMEM (smallest)
    vmem_limit = max(32 * 1024 * 1024,
                     min(int(0.75 * vmem_cap), 96 * 1024 * 1024))
    budget = min(int(0.55 * vmem_cap), vmem_limit - 4 * 1024 * 1024)

    th = _pick_row_tile(B, Ho, Wo, Cin, Cp, compute_dtype, out_dtype, budget)
    n_t = Ho // th

    # ---- XLA-side layout glue (pure rearrangement, ~1x activation bytes) ----
    x = jnp.transpose(x_nchw, (0, 2, 3, 1)).astype(compute_dtype)   # NHWC
    xp = jnp.pad(x, ((0, 0), (pad, pad), (pad, pad), (0, 0)))

    # Space-to-depth phase split of the stride-2 conv (parity of padded coords).
    ee = xp[:, 0::2, 0::2, :]                   # (B, Ho+1, Wo+1, Cin)
    eo = xp[:, 0::2, 1::2, :][:, :, :Wo, :]     # (B, Ho+1, Wo,   Cin)
    oe = xp[:, 1::2, 0::2, :][:, :Ho, :, :]     # (B, Ho,   Wo+1, Cin)
    oo = xp[:, 1::2, 1::2, :][:, :Ho, :Wo, :]   # (B, Ho,   Wo,   Cin)

    # Even-row phases are needed at rows [t*th, t*th+th] per tile: build
    # per-tile windows with ONE duplicated halo row (n_t extra rows total,
    # instead of a fully shifted second copy).
    def _window(a):          # (B, Ho+1, Wc, Cin) -> (B, n_t, th+1, Wc, Cin)
        main = a[:, :Ho].reshape(B, n_t, th, a.shape[2], Cin)
        halo = a[:, th::th][:, :, None]
        return jnp.concatenate([main, halo], axis=2)

    ee_w = _window(ee)
    eo_w = _window(eo)

    # Per-tap weights: (Cout, Cin, 3, 3) -> (9*Cin, Cp), tap-major (ki*3+kj).
    w_taps = jnp.transpose(w_oihw, (2, 3, 1, 0)).reshape(kh * kw * Cin, Cout)
    w_taps = jnp.pad(w_taps, ((0, 0), (0, Cp - Cout))).astype(compute_dtype)
    b2 = jnp.pad(bias.astype(jnp.float32), (0, Cp - Cout)).reshape(1, Cp)
    g2 = jnp.pad(gamma.astype(jnp.float32), (0, Cp - Cout)).reshape(1, Cp)
    be2 = jnp.pad(beta.astype(jnp.float32), (0, Cp - Cout)).reshape(1, Cp)

    grid = (B, n_t)

    cdt_b = np.dtype(compute_dtype).itemsize
    bytes_in = cdt_b * (ee_w.size + eo_w.size + oe.size + oo.size + w_taps.size)
    bytes_in += 4 * (b2.size + g2.size + be2.size)
    bytes_out = np.dtype(out_dtype).itemsize * B * N * Cp
    cost = pl.CostEstimate(flops=2 * B * N * (kh * kw * Cin) * Cp,
                           transcendentals=B * N,
                           bytes_accessed=int(bytes_in + bytes_out))

    kernel = functools.partial(_merge_embed_kernel, th=th, wo=Wo, cin=Cin,
                               cout=Cout, cp=Cp, eps=eps)

    # NOTE: weights/bias/gamma/beta are grid-invariant; pipeline_mode=
    # pl.Buffered(1) would drop their second VMEM buffer (tiny saving, matters
    # most on v7x's 64 MiB); left at the default for portability.
    out = pl.pallas_call(
        kernel,
        out_shape=jax.ShapeDtypeStruct((B, N, Cp), out_dtype),
        grid=grid,
        in_specs=[
            pl.BlockSpec((None, None, th + 1, Wo + 1, Cin),
                         lambda b, t: (b, t, 0, 0, 0)),        # ee window
            pl.BlockSpec((None, None, th + 1, Wo, Cin),
                         lambda b, t: (b, t, 0, 0, 0)),        # eo window
            pl.BlockSpec((None, th, Wo + 1, Cin),
                         lambda b, t: (b, t, 0, 0)),           # oe
            pl.BlockSpec((None, th, Wo, Cin),
                         lambda b, t: (b, t, 0, 0)),           # oo
            pl.BlockSpec((kh * kw * Cin, Cp), lambda b, t: (0, 0)),  # weights
            pl.BlockSpec((1, Cp), lambda b, t: (0, 0)),        # bias
            pl.BlockSpec((1, Cp), lambda b, t: (0, 0)),        # gamma
            pl.BlockSpec((1, Cp), lambda b, t: (0, 0)),        # beta
        ],
        out_specs=pl.BlockSpec((None, th * Wo, Cp), lambda b, t: (b, t, 0)),
        scratch_shapes=[pltpu.VMEM((th * Wo, kh * kw * Cin), compute_dtype)],
        compiler_params=pltpu.CompilerParams(
            dimension_semantics=("parallel", "parallel"),
            vmem_limit_bytes=vmem_limit),
        cost_estimate=cost,
    )(ee_w, eo_w, oe, oo, w_taps, b2, g2, be2)

    return out if Cp == Cout else out[:, :, :Cout]


# ---------------------------------------------------------------------------
# Reference (conv with bf16-quantized operands, f32 accumulation) & test
# ---------------------------------------------------------------------------
def _reference(x_nchw, w_oihw, bias, gamma, beta, *, eps=1e-5,
               compute_dtype=jnp.bfloat16):
    xq = x_nchw.astype(compute_dtype).astype(jnp.float32)
    wq = w_oihw.astype(compute_dtype).astype(jnp.float32)
    y = lax.conv_general_dilated(
        xq, wq, window_strides=(2, 2), padding=((1, 1), (1, 1)),
        dimension_numbers=("NCHW", "OIHW", "NCHW"))
    y = y + bias.reshape(1, -1, 1, 1)
    B, C = y.shape[:2]
    y = y.reshape(B, C, -1).transpose(0, 2, 1)                 # (B, N, C)
    mean = jnp.mean(y, axis=-1, keepdims=True)
    var = jnp.mean(jnp.square(y - mean), axis=-1, keepdims=True)
    return (y - mean) / jnp.sqrt(var + eps) * gamma + beta


if __name__ == "__main__":
    key = jax.random.PRNGKey(0)
    k1, k2, k3, k4, k5 = jax.random.split(key, 5)

    # Small shapes consistent with the module: dim=4 -> dim_out=8, 16x16 spatial.
    B, Cin, H, W = 2, 4, 16, 16
    Cout = 8

    x = jax.random.normal(k1, (B, Cin, H, W), jnp.float32)
    fan_in = Cin * 3 * 3
    w = jax.random.uniform(k2, (Cout, Cin, 3, 3), jnp.float32, -1.0, 1.0) / np.sqrt(fan_in)
    b = jax.random.uniform(k3, (Cout,), jnp.float32, -1.0, 1.0) / np.sqrt(fan_in)
    gamma = 1.0 + 0.1 * jax.random.normal(k4, (Cout,), jnp.float32)
    beta = 0.1 * jax.random.normal(k5, (Cout,), jnp.float32)

    ref = _reference(x, w, b, gamma, beta)

    # f32 output (matches the PyTorch module's dtype) — strict check.
    out = merge_embed(x, w, b, gamma, beta, out_dtype=jnp.float32)
    jax.block_until_ready(out)
    np.testing.assert_allclose(np.asarray(out), np.asarray(ref),
                               rtol=1e-3, atol=1e-3)

    # bf16 output path (preferred on HBM-bound v6e/v7x) — loose check.
    out_bf16 = merge_embed(x, w, b, gamma, beta, out_dtype=jnp.bfloat16)
    jax.block_until_ready(out_bf16)
    np.testing.assert_allclose(np.asarray(out_bf16.astype(jnp.float32)),
                               np.asarray(ref), rtol=3e-2, atol=3e-2)

    print("KERNEL_OK")
</pallas_src>

<mosaic_0001>
module attributes {stable_mosaic.version = 11 : i64} {
  func.func @_merge_embed_kernel(%arg0: i32, %arg1: i32, %arg2: memref<1x1x9x9x4xbf16, #tpu.memory_space<vmem>>, %arg3: memref<1x1x9x8x4xbf16, #tpu.memory_space<vmem>>, %arg4: memref<1x8x9x4xbf16, #tpu.memory_space<vmem>>, %arg5: memref<1x8x8x4xbf16, #tpu.memory_space<vmem>>, %arg6: memref<36x128xbf16, #tpu.memory_space<vmem>>, %arg7: memref<1x128xf32, #tpu.memory_space<vmem>>, %arg8: memref<1x128xf32, #tpu.memory_space<vmem>>, %arg9: memref<1x128xf32, #tpu.memory_space<vmem>>, %arg10: memref<1x64x128xf32, #tpu.memory_space<vmem>>, %arg11: memref<64x36xbf16, #tpu.memory_space<vmem>>) attributes {dimension_semantics = [#tpu.dimension_semantics<parallel>, #tpu.dimension_semantics<parallel>], iteration_bounds = array<i64: 2, 1>, scalar_prefetch = 0 : i64, scratch_operands = 1 : i64, tpu.core_type = #tpu.core_type<tc>, window_params = [{transform_indices = @transform_0, window_bounds = array<i64: 1, 1, 9, 9, 4>}, {transform_indices = @transform_1, window_bounds = array<i64: 1, 1, 9, 8, 4>}, {transform_indices = @transform_2, window_bounds = array<i64: 1, 8, 9, 4>}, {transform_indices = @transform_3, window_bounds = array<i64: 1, 8, 8, 4>}, {pipeline_mode = #tpu.pipeline_mode<synchronous>, transform_indices = @transform_4, window_bounds = array<i64: 36, 128>}, {pipeline_mode = #tpu.pipeline_mode<synchronous>, transform_indices = @transform_5, window_bounds = array<i64: 1, 128>}, {pipeline_mode = #tpu.pipeline_mode<synchronous>, transform_indices = @transform_6, window_bounds = array<i64: 1, 128>}, {pipeline_mode = #tpu.pipeline_mode<synchronous>, transform_indices = @transform_7, window_bounds = array<i64: 1, 128>}, {transform_indices = @transform_8, window_bounds = array<i64: 1, 64, 128>}]} {
    %c0 = arith.constant 0 : index
    %c0_0 = arith.constant 0 : index
    %c0_1 = arith.constant 0 : index
    %c0_2 = arith.constant 0 : index
    %c0_3 = arith.constant 0 : index
    %0 = vector.load %arg2[%c0, %c0_0, %c0_1, %c0_2, %c0_3] : memref<1x1x9x9x4xbf16, #tpu.memory_space<vmem>>, vector<1x1x8x8x4xbf16>
    %1 = vector.shape_cast %0 : vector<1x1x8x8x4xbf16> to vector<8x8x4xbf16>
    %c0_4 = arith.constant 0 : index
    %c0_5 = arith.constant 0 : index
    %c0_6 = arith.constant 0 : index
    %c0_7 = arith.constant 0 : index
    %c0_8 = arith.constant 0 : index
    %2 = vector.load %arg3[%c0_4, %c0_5, %c0_6, %c0_7, %c0_8] : memref<1x1x9x8x4xbf16, #tpu.memory_space<vmem>>, vector<1x1x8x8x4xbf16>
    %3 = vector.shape_cast %2 : vector<1x1x8x8x4xbf16> to vector<8x8x4xbf16>
    %c0_9 = arith.constant 0 : index
    %c0_10 = arith.constant 0 : index
    %c0_11 = arith.constant 0 : index
    %c1 = arith.constant 1 : index
    %c0_12 = arith.constant 0 : index
    %4 = vector.load %arg2[%c0_9, %c0_10, %c0_11, %c1, %c0_12] : memref<1x1x9x9x4xbf16, #tpu.memory_space<vmem>>, vector<1x1x8x8x4xbf16>
    %5 = vector.shape_cast %4 : vector<1x1x8x8x4xbf16> to vector<8x8x4xbf16>
    %c0_13 = arith.constant 0 : index
    %c0_14 = arith.constant 0 : index
    %c0_15 = arith.constant 0 : index
    %c0_16 = arith.constant 0 : index
    %6 = vector.load %arg4[%c0_13, %c0_14, %c0_15, %c0_16] : memref<1x8x9x4xbf16, #tpu.memory_space<vmem>>, vector<1x8x8x4xbf16>
    %7 = vector.shape_cast %6 : vector<1x8x8x4xbf16> to vector<8x8x4xbf16>
    %c0_17 = arith.constant 0 : index
    %c0_18 = arith.constant 0 : index
    %c0_19 = arith.constant 0 : index
    %c0_20 = arith.constant 0 : index
    %8 = vector.load %arg5[%c0_17, %c0_18, %c0_19, %c0_20] : memref<1x8x8x4xbf16, #tpu.memory_space<vmem>>, vector<1x8x8x4xbf16>
    %9 = vector.shape_cast %8 : vector<1x8x8x4xbf16> to vector<8x8x4xbf16>
    %c0_21 = arith.constant 0 : index
    %c0_22 = arith.constant 0 : index
    %c1_23 = arith.constant 1 : index
    %c0_24 = arith.constant 0 : index
    %10 = vector.load %arg4[%c0_21, %c0_22, %c1_23, %c0_24] : memref<1x8x9x4xbf16, #tpu.memory_space<vmem>>, vector<1x8x8x4xbf16>
    %11 = vector.shape_cast %10 : vector<1x8x8x4xbf16> to vector<8x8x4xbf16>
    %c0_25 = arith.constant 0 : index
    %c0_26 = arith.constant 0 : index
    %c1_27 = arith.constant 1 : index
    %c0_28 = arith.constant 0 : index
    %c0_29 = arith.constant 0 : index
    %12 = vector.load %arg2[%c0_25, %c0_26, %c1_27, %c0_28, %c0_29] : memref<1x1x9x9x4xbf16, #tpu.memory_space<vmem>>, vector<1x1x8x8x4xbf16>
    %13 = vector.shape_cast %12 : vector<1x1x8x8x4xbf16> to vector<8x8x4xbf16>
    %c0_30 = arith.constant 0 : index
    %c0_31 = arith.constant 0 : index
    %c1_32 = arith.constant 1 : index
    %c0_33 = arith.constant 0 : index
    %c0_34 = arith.constant 0 : index
    %14 = vector.load %arg3[%c0_30, %c0_31, %c1_32, %c0_33, %c0_34] : memref<1x1x9x8x4xbf16, #tpu.memory_space<vmem>>, vector<1x1x8x8x4xbf16>
    %15 = vector.shape_cast %14 : vector<1x1x8x8x4xbf16> to vector<8x8x4xbf16>
    %c0_35 = arith.constant 0 : index
    %c0_36 = arith.constant 0 : index
    %c1_37 = arith.constant 1 : index
    %c1_38 = arith.constant 1 : index
    %c0_39 = arith.constant 0 : index
    %16 = vector.load %arg2[%c0_35, %c0_36, %c1_37, %c1_38, %c0_39] : memref<1x1x9x9x4xbf16, #tpu.memory_space<vmem>>, vector<1x1x8x8x4xbf16>
    %17 = vector.shape_cast %16 : vector<1x1x8x8x4xbf16> to vector<8x8x4xbf16>
    %18 = vector.shape_cast %1 : vector<8x8x4xbf16> to vector<64x4xbf16>
    %c0_40 = arith.constant 0 : index
    %c0_41 = arith.constant 0 : index
    %19 = vector.load %arg11[%c0_40, %c0_41] : memref<64x36xbf16, #tpu.memory_space<vmem>>, vector<64x4xbf16>
    tpu.vector_store %arg11[%c0_40, %c0_41], %18 {strides = array<i32>} : memref<64x36xbf16, #tpu.memory_space<vmem>>, vector<64x4xbf16>,
    %20 = vector.shape_cast %3 : vector<8x8x4xbf16> to vector<64x4xbf16>
    %c0_42 = arith.constant 0 : index
    %c4 = arith.constant 4 : index
    %21 = vector.load %arg11[%c0_42, %c4] : memref<64x36xbf16, #tpu.memory_space<vmem>>, vector<64x4xbf16>
    tpu.vector_store %arg11[%c0_42, %c4], %20 {strides = array<i32>} : memref<64x36xbf16, #tpu.memory_space<vmem>>, vector<64x4xbf16>,
    %22 = vector.shape_cast %5 : vector<8x8x4xbf16> to vector<64x4xbf16>
    %c0_43 = arith.constant 0 : index
    %c8 = arith.constant 8 : index
    %23 = vector.load %arg11[%c0_43, %c8] : memref<64x36xbf16, #tpu.memory_space<vmem>>, vector<64x4xbf16>
    tpu.vector_store %arg11[%c0_43, %c8], %22 {strides = array<i32>} : memref<64x36xbf16, #tpu.memory_space<vmem>>, vector<64x4xbf16>,
    %24 = vector.shape_cast %7 : vector<8x8x4xbf16> to vector<64x4xbf16>
    %c0_44 = arith.constant 0 : index
    %c12 = arith.constant 12 : index
    %25 = vector.load %arg11[%c0_44, %c12] : memref<64x36xbf16, #tpu.memory_space<vmem>>, vector<64x4xbf16>
    tpu.vector_store %arg11[%c0_44, %c12], %24 {strides = array<i32>} : memref<64x36xbf16, #tpu.memory_space<vmem>>, vector<64x4xbf16>,
    %26 = vector.shape_cast %9 : vector<8x8x4xbf16> to vector<64x4xbf16>
    %c0_45 = arith.constant 0 : index
    %c16 = arith.constant 16 : index
    %27 = vector.load %arg11[%c0_45, %c16] : memref<64x36xbf16, #tpu.memory_space<vmem>>, vector<64x4xbf16>
    tpu.vector_store %arg11[%c0_45, %c16], %26 {strides = array<i32>} : memref<64x36xbf16, #tpu.memory_space<vmem>>, vector<64x4xbf16>,
    %28 = vector.shape_cast %11 : vector<8x8x4xbf16> to vector<64x4xbf16>
    %c0_46 = arith.constant 0 : index
    %c20 = arith.constant 20 : index
    %29 = vector.load %arg11[%c0_46, %c20] : memref<64x36xbf16, #tpu.memory_space<vmem>>, vector<64x4xbf16>
    tpu.vector_store %arg11[%c0_46, %c20], %28 {strides = array<i32>} : memref<64x36xbf16, #tpu.memory_space<vmem>>, vector<64x4xbf16>,
    %30 = vector.shape_cast %13 : vector<8x8x4xbf16> to vector<64x4xbf16>
    %c0_47 = arith.constant 0 : index
    %c24 = arith.constant 24 : index
    %31 = vector.load %arg11[%c0_47, %c24] : memref<64x36xbf16, #tpu.memory_space<vmem>>, vector<64x4xbf16>
    tpu.vector_store %arg11[%c0_47, %c24], %30 {strides = array<i32>} : memref<64x36xbf16, #tpu.memory_space<vmem>>, vector<64x4xbf16>,
    %32 = vector.shape_cast %15 : vector<8x8x4xbf16> to vector<64x4xbf16>
    %c0_48 = arith.constant 0 : index
    %c28 = arith.constant 28 : index
    %33 = vector.load %arg11[%c0_48, %c28] : memref<64x36xbf16, #tpu.memory_space<vmem>>, vector<64x4xbf16>
    tpu.vector_store %arg11[%c0_48, %c28], %32 {strides = array<i32>} : memref<64x36xbf16, #tpu.memory_space<vmem>>, vector<64x4xbf16>,
    %34 = vector.shape_cast %17 : vector<8x8x4xbf16> to vector<64x4xbf16>
    %c0_49 = arith.constant 0 : index
    %c32 = arith.constant 32 : index
    %35 = vector.load %arg11[%c0_49, %c32] : memref<64x36xbf16, #tpu.memory_space<vmem>>, vector<64x4xbf16>
    tpu.vector_store %arg11[%c0_49, %c32], %34 {strides = array<i32>} : memref<64x36xbf16, #tpu.memory_space<vmem>>, vector<64x4xbf16>,
    %c0_50 = arith.constant 0 : index
    %c0_51 = arith.constant 0 : index
    %36 = vector.load %arg11[%c0_50, %c0_51] : memref<64x36xbf16, #tpu.memory_space<vmem>>, vector<64x36xbf16>
    %c0_52 = arith.constant 0 : index
    %c0_53 = arith.constant 0 : index
    %37 = vector.load %arg6[%c0_52, %c0_53] : memref<36x128xbf16, #tpu.memory_space<vmem>>, vector<36x128xbf16>
    %cst = arith.constant dense<0.000000e+00> : vector<64x128xf32>
    %38 = tpu.matmul %36, %37, %cst {dimension_numbers = #tpu.dot_dimension_numbers<[1], [0], [0], [1], [0, 0, 1, 1], [], []>} : vector<64x36xbf16>, vector<36x128xbf16>, vector<64x128xf32> -> vector<64x128xf32>
    %c0_54 = arith.constant 0 : index
    %c0_55 = arith.constant 0 : index
    %39 = vector.load %arg7[%c0_54, %c0_55] : memref<1x128xf32, #tpu.memory_space<vmem>>, vector<1x128xf32>
    %40 = vector.broadcast %39 : vector<1x128xf32> to vector<64x128xf32>
    %41 = arith.addf %38, %40 : vector<64x128xf32>
    %42 = tpu.iota {dimensions = array<i32: 1>} : vector<1x128xi32>
    %c8_i32 = arith.constant 8 : i32
    %43 = vector.broadcast %c8_i32 : i32 to vector<1x128xi32>
    %44 = arith.cmpi slt, %42, %43 : vector<1x128xi32>
    %cst_56 = arith.constant 0.000000e+00 : f32
    %45 = vector.shape_cast %44 : vector<1x128xi1> to vector<1x128xi1>
    %46 = vector.broadcast %45 : vector<1x128xi1> to vector<64x128xi1>
    %47 = vector.broadcast %cst_56 : f32 to vector<64x128xf32>
    %48 = arith.select %46, %41, %47 : vector<64x128xi1>, vector<64x128xf32>
    %cst_57 = arith.constant dense<0.000000e+00> : vector<64xf32>
    %49 = vector.multi_reduction <add>, %48, %cst_57 [1] : vector<64x128xf32> to vector<64xf32>
    %50 = vector.shape_cast %49 : vector<64xf32> to vector<64x1xf32>
    %cst_58 = arith.constant 1.250000e-01 : f32
    %51 = vector.broadcast %cst_58 : f32 to vector<64x1xf32>
    %52 = arith.mulf %50, %51 : vector<64x1xf32>
    %53 = vector.broadcast %52 : vector<64x1xf32> to vector<64x128xf32>
    %54 = arith.subf %41, %53 : vector<64x128xf32>
    %cst_59 = arith.constant 0.000000e+00 : f32
    %55 = vector.shape_cast %44 : vector<1x128xi1> to vector<1x128xi1>
    %56 = vector.broadcast %55 : vector<1x128xi1> to vector<64x128xi1>
    %57 = vector.broadcast %cst_59 : f32 to vector<64x128xf32>
    %58 = arith.select %56, %54, %57 : vector<64x128xi1>, vector<64x128xf32>
    %59 = arith.mulf %58, %58 : vector<64x128xf32>
    %cst_60 = arith.constant dense<0.000000e+00> : vector<64xf32>
    %60 = vector.multi_reduction <add>, %59, %cst_60 [1] : vector<64x128xf32> to vector<64xf32>
    %61 = vector.shape_cast %60 : vector<64xf32> to vector<64x1xf32>
    %cst_61 = arith.constant 1.250000e-01 : f32
    %62 = vector.broadcast %cst_61 : f32 to vector<64x1xf32>
    %63 = arith.mulf %61, %62 : vector<64x1xf32>
    %cst_62 = arith.constant 9.99999974E-6 : f32
    %64 = vector.broadcast %cst_62 : f32 to vector<64x1xf32>
    %65 = arith.addf %63, %64 : vector<64x1xf32>
    %66 = math.rsqrt %65 : vector<64x1xf32>
    %67 = vector.broadcast %66 : vector<64x1xf32> to vector<64x128xf32>
    %68 = arith.mulf %58, %67 : vector<64x128xf32>
    %c0_63 = arith.constant 0 : index
    %c0_64 = arith.constant 0 : index
    %69 = vector.load %arg8[%c0_63, %c0_64] : memref<1x128xf32, #tpu.memory_space<vmem>>, vector<1x128xf32>
    %70 = vector.broadcast %69 : vector<1x128xf32> to vector<64x128xf32>
    %71 = arith.mulf %68, %70 : vector<64x128xf32>
    %c0_65 = arith.constant 0 : index
    %c0_66 = arith.constant 0 : index
    %72 = vector.load %arg9[%c0_65, %c0_66] : memref<1x128xf32, #tpu.memory_space<vmem>>, vector<1x128xf32>
    %73 = vector.broadcast %72 : vector<1x128xf32> to vector<64x128xf32>
    %74 = arith.addf %71, %73 : vector<64x128xf32>
    %c0_67 = arith.constant 0 : index
    %c0_68 = arith.constant 0 : index
    %c0_69 = arith.constant 0 : index
    %75 = vector.load %arg10[%c0_67, %c0_68, %c0_69] : memref<1x64x128xf32, #tpu.memory_space<vmem>>, vector<1x64x128xf32>
    %76 = vector.shape_cast %75 : vector<1x64x128xf32> to vector<64x128xf32>
    %77 = vector.shape_cast %74 : vector<64x128xf32> to vector<1x64x128xf32>
    tpu.vector_store %arg10[%c0_67, %c0_68, %c0_69], %77 {strides = array<i32>} : memref<1x64x128xf32, #tpu.memory_space<vmem>>, vector<1x64x128xf32>,
    return
  }
  func.func @transform_0(%arg0: i32, %arg1: i32) -> (i32, i32, i32, i32, i32) {
    %c0_i32 = arith.constant 0 : i32
    %c0_i32_0 = arith.constant 0 : i32
    %c0_i32_1 = arith.constant 0 : i32
    %c0_i32_2 = arith.constant 0 : i32
    return %arg0, %arg1, %c0_i32, %c0_i32_0, %c0_i32_1 : i32, i32, i32, i32, i32
  }
  func.func @transform_1(%arg0: i32, %arg1: i32) -> (i32, i32, i32, i32, i32) {
    %c0_i32 = arith.constant 0 : i32
    %c0_i32_0 = arith.constant 0 : i32
    %c0_i32_1 = arith.constant 0 : i32
    %c0_i32_2 = arith.constant 0 : i32
    return %arg0, %arg1, %c0_i32, %c0_i32_0, %c0_i32_1 : i32, i32, i32, i32, i32
  }
  func.func @transform_2(%arg0: i32, %arg1: i32) -> (i32, i32, i32, i32) {
    %c0_i32 = arith.constant 0 : i32
    %c0_i32_0 = arith.constant 0 : i32
    %c0_i32_1 = arith.constant 0 : i32
    return %arg0, %arg1, %c0_i32, %c0_i32_0 : i32, i32, i32, i32
  }
  func.func @transform_3(%arg0: i32, %arg1: i32) -> (i32, i32, i32, i32) {
    %c0_i32 = arith.constant 0 : i32
    %c0_i32_0 = arith.constant 0 : i32
    %c0_i32_1 = arith.constant 0 : i32
    return %arg0, %arg1, %c0_i32, %c0_i32_0 : i32, i32, i32, i32
  }
  func.func @transform_4(%arg0: i32, %arg1: i32) -> (i32, i32) {
    %c0_i32 = arith.constant 0 : i32
    %c0_i32_0 = arith.constant 0 : i32
    %c0_i32_1 = arith.constant 0 : i32
    return %c0_i32, %c0_i32_0 : i32, i32
  }
  func.func @transform_5(%arg0: i32, %arg1: i32) -> (i32, i32) {
    %c0_i32 = arith.constant 0 : i32
    %c0_i32_0 = arith.constant 0 : i32
    %c0_i32_1 = arith.constant 0 : i32
    return %c0_i32, %c0_i32_0 : i32, i32
  }
  func.func @transform_6(%arg0: i32, %arg1: i32) -> (i32, i32) {
    %c0_i32 = arith.constant 0 : i32
    %c0_i32_0 = arith.constant 0 : i32
    %c0_i32_1 = arith.constant 0 : i32
    return %c0_i32, %c0_i32_0 : i32, i32
  }
  func.func @transform_7(%arg0: i32, %arg1: i32) -> (i32, i32) {
    %c0_i32 = arith.constant 0 : i32
    %c0_i32_0 = arith.constant 0 : i32
    %c0_i32_1 = arith.constant 0 : i32
    return %c0_i32, %c0_i32_0 : i32, i32
  }
  func.func @transform_8(%arg0: i32, %arg1: i32) -> (i32, i32, i32) {
    %c0_i32 = arith.constant 0 : i32
    %c0_i32_0 = arith.constant 0 : i32
    return %arg0, %arg1, %c0_i32 : i32, i32, i32
  }
}

</mosaic_0001>

<llo_original>
// kernel: tpu_custom_call.1
$region0: #{tpu_custom_call.1}
  #allocation0 [shape = 'u32[]', space=smem, size = 0x4, offset = 0x4, fixed_abs, tag = 'smem constant byte address 0x4 - core index']
  #allocation1 [shape = 'u32[72,128]{1,0:T(1,128)}', space=vmem, size = 0x9000, scoped, tag = 'internal scratch']
  #allocation2 [shape = 'bf16[64,36]{1,0:T(8,128)(2,1)}', space=vmem, size = 0x4000, scoped, tag = 'scratch operand']
  %s0 = inlined_call_operand.vmem [shape: bf16[2,1,9,9,4], index: 0, kind: input, shape index: {}]
  %s1 = inlined_call_operand.vmem [shape: bf16[2,1,9,8,4], index: 1, kind: input, shape index: {}]
  %s2 = inlined_call_operand.vmem [shape: bf16[2,8,9,4], index: 2, kind: input, shape index: {}]
  %s3 = inlined_call_operand.vmem [shape: bf16[2,8,8,4], index: 3, kind: input, shape index: {}]
  %s4 = inlined_call_operand.vmem [shape: bf16[36,128], index: 4, kind: input, shape index: {}]
  %s5 = inlined_call_operand.vmem [shape: f32[1,128], index: 5, kind: input, shape index: {}]
  %s6 = inlined_call_operand.vmem [shape: f32[1,128], index: 6, kind: input, shape index: {}]
  %s7 = inlined_call_operand.vmem [shape: f32[1,128], index: 7, kind: input, shape index: {}]
  %s8 = inlined_call_operand.hbm [shape: f32[2,64,128], index: 8, kind: output, shape index: {}]
  %s9 = sld [smem:[#allocation0]]
  $region65: #{tpu_custom_call.1} parent=0
    _
  %s11 = ssub.s32 1, %s9
  %s12 = scalar_select 0, %s11, %s9
  $region1: #{tpu_custom_call.1} parent=0
    #allocation3 [shape = 'u8[65536]{0}', space=vmem, size = 0x10000, scoped, tag = 'output window, operand 0']
    #allocation4 [shape = 's32[2]{0}', space=sflag, size = 0x8, scoped, tag = 'scoped memory for tpu_custom_call.1']
    %13 = vsyncpa [#allocation4], 0
    %s14 = scalar_lea.sflag [#allocation4], 1
    %15 = vsyncpa %s14, 0
    loop: start=0, step=1, limit=4
    $region2: #{tpu_custom_call.1} parent=1 // loop_pre_header
      _
    $region3: #{tpu_custom_call.1} parent=1 // loop_header
      %s17 = sphi 0, %s21
      %p18 = scmp.ge.s32.totalorder %s17, 4
      %s24 = sphi 0, %s36
      %s25 = sphi 0, %s32
      %s26 = sphi 0, %s24
      %s27 = sphi 0, %s25
      %s28 = sphi 0, %s26
      %s29 = sphi 0, %s27
      %s41 = sphi 0, %s43
      %s44 = sphi 0, %s41
      %s45 = sphi 0, %s44
      %s61 = sphi 0, %s45
      %s69 = sphi 0, %s71
      %s72 = sphi 0, %s69
      %s73 = sphi 0, %s72
      %s89 = sphi 0, %s73
      %s97 = sphi 0, %s99
      %s100 = sphi 0, %s97
      %s101 = sphi 0, %s100
      %s117 = sphi 0, %s101
      %s125 = sphi 0, %s127
      %s128 = sphi 0, %s125
      %s129 = sphi 0, %s128
      %s145 = sphi 0, %s129
      %s149 = sphi 0, %s149
      %s151 = sphi 0, %s149
      %s152 = sphi 0, %s151
      %s166 = sphi 0, %s152
      %s170 = sphi 0, %s170
      %s172 = sphi 0, %s170
      %s173 = sphi 0, %s172
      %s187 = sphi 0, %s173
      %s191 = sphi 0, %s191
      %s193 = sphi 0, %s191
      %s194 = sphi 0, %s193
      %s208 = sphi 0, %s194
      %s212 = sphi 0, %s212
      %s214 = sphi 0, %s212
      %s215 = sphi 0, %s214
      %s229 = sphi 0, %s215
      %s237 = sphi 0, %s239
      %s240 = sphi 0, %s237
      %s241 = sphi 0, %s240
      %s257 = sphi 0, %s241
    $region4: #{tpu_custom_call.1} parent=1 // loop_header_branch
      %20 = sbr.rel (%p18) target = $region8
    $region5: #{tpu_custom_call.1} parent=1 // loop_body
      %s22 = ssub.s32 %s17, 1
      %s23 = ssub.s32 %s17, 2
      %s30 = sadd.s32 1, %s25
      %p31 = scmp.ge.s32.totalorder %s30, 1
      %s32 = scalar_select %p31, 0, %s30
      %s33 = sadd.s32 1, %s24
      %s34 = scalar_select %p31, %s33, %s24
      %p35 = scmp.ge.s32.totalorder %s34, 2
      %s36 = scalar_select %p35, 0, %s34
      %s37 = ssub.s32 %s24, %s36
      %s38 = ssub.s32 %s25, %s32
      %s39 = sor.u32 %s37, %s38
      %p40 = scmp.eq.s32.totalorder %s39, 0
      %s42 = sadd.s32 %s41, 1
      %s43 = scalar_select %p40, %s41, %s42
      %p46 = pneg %p40
      %p47 = scmp.eq.s32.totalorder %s17, 1
      %p48 = por %p46, %p47
      %p49 = scmp.ne.s32.totalorder %s41, %s44
      %p50 = scmp.eq.s32.totalorder %s17, 0
      %p51 = por %p49, %p50
      %p52 = scmp.ne.s32.totalorder %s41, %s44
      %p53 = scmp.eq.s32.totalorder %s22, 1
      %p54 = por %p52, %p53
      %p55 = scmp.ne.s32.totalorder %s44, %s45
      %p56 = scmp.eq.s32.totalorder %s22, 0
      %p57 = por %p55, %p56
      %p58 = scmp.ne.s32.totalorder %s44, %s45
      %p59 = scmp.eq.s32.totalorder %s23, 1
      %p60 = por %p58, %p59
      %p62 = scmp.ne.s32.totalorder %s45, %s61
      %p63 = scmp.eq.s32.totalorder %s23, 0
      %p64 = por %p62, %p63
      %s65 = ssub.s32 %s24, %s36
      %s66 = ssub.s32 %s25, %s32
      %s67 = sor.u32 %s65, %s66
      %p68 = scmp.eq.s32.totalorder %s67, 0
      %s70 = sadd.s32 %s69, 1
      %s71 = scalar_select %p68, %s69, %s70
      %p74 = pneg %p68
      %p75 = scmp.eq.s32.totalorder %s17, 1
      %p76 = por %p74, %p75
      %p77 = scmp.ne.s32.totalorder %s69, %s72
      %p78 = scmp.eq.s32.totalorder %s17, 0
      %p79 = por %p77, %p78
      %p80 = scmp.ne.s32.totalorder %s69, %s72
      %p81 = scmp.eq.s32.totalorder %s22, 1
      %p82 = por %p80, %p81
      %p83 = scmp.ne.s32.totalorder %s72, %s73
      %p84 = scmp.eq.s32.totalorder %s22, 0
      %p85 = por %p83, %p84
      %p86 = scmp.ne.s32.totalorder %s72, %s73
      %p87 = scmp.eq.s32.totalorder %s23, 1
      %p88 = por %p86, %p87
      %p90 = scmp.ne.s32.totalorder %s73, %s89
      %p91 = scmp.eq.s32.totalorder %s23, 0
      %p92 = por %p90, %p91
      %s93 = ssub.s32 %s24, %s36
      %s94 = ssub.s32 %s25, %s32
      %s95 = sor.u32 %s93, %s94
      %p96 = scmp.eq.s32.totalorder %s95, 0
      %s98 = sadd.s32 %s97, 1
      %s99 = scalar_select %p96, %s97, %s98
      %p102 = pneg %p96
      %p103 = scmp.eq.s32.totalorder %s17, 1
      %p104 = por %p102, %p103
      %p105 = scmp.ne.s32.totalorder %s97, %s100
      %p106 = scmp.eq.s32.totalorder %s17, 0
      %p107 = por %p105, %p106
      %p108 = scmp.ne.s32.totalorder %s97, %s100
      %p109 = scmp.eq.s32.totalorder %s22, 1
      %p110 = por %p108, %p109
      %p111 = scmp.ne.s32.totalorder %s100, %s101
      %p112 = scmp.eq.s32.totalorder %s22, 0
      %p113 = por %p111, %p112
      %p114 = scmp.ne.s32.totalorder %s100, %s101
      %p115 = scmp.eq.s32.totalorder %s23, 1
      %p116 = por %p114, %p115
      %p118 = scmp.ne.s32.totalorder %s101, %s117
      %p119 = scmp.eq.s32.totalorder %s23, 0
      %p120 = por %p118, %p119
      %s121 = ssub.s32 %s24, %s36
      %s122 = ssub.s32 %s25, %s32
      %s123 = sor.u32 %s121, %s122
      %p124 = scmp.eq.s32.totalorder %s123, 0
      %s126 = sadd.s32 %s125, 1
      %s127 = scalar_select %p124, %s125, %s126
      %p130 = pneg %p124
      %p131 = scmp.eq.s32.totalorder %s17, 1
      %p132 = por %p130, %p131
      %p133 = scmp.ne.s32.totalorder %s125, %s128
      %p134 = scmp.eq.s32.totalorder %s17, 0
      %p135 = por %p133, %p134
      %p136 = scmp.ne.s32.totalorder %s125, %s128
      %p137 = scmp.eq.s32.totalorder %s22, 1
      %p138 = por %p136, %p137
      %p139 = scmp.ne.s32.totalorder %s128, %s129
      %p140 = scmp.eq.s32.totalorder %s22, 0
      %p141 = por %p139, %p140
      %p142 = scmp.ne.s32.totalorder %s128, %s129
      %p143 = scmp.eq.s32.totalorder %s23, 1
      %p144 = por %p142, %p143
      %p146 = scmp.ne.s32.totalorder %s129, %s145
      %p147 = scmp.eq.s32.totalorder %s23, 0
      %p148 = por %p146, %p147
      %s150 = sadd.s32 %s149, 1
      %p153 = scmp.eq.s32.totalorder %s17, 1
      %p154 = scmp.ne.s32.totalorder %s149, %s151
      %p155 = scmp.eq.s32.totalorder %s17, 0
      %p156 = por %p154, %p155
      %p157 = scmp.ne.s32.totalorder %s149, %s151
      %p158 = scmp.eq.s32.totalorder %s22, 1
      %p159 = por %p157, %p158
      %p160 = scmp.ne.s32.totalorder %s151, %s152
      %p161 = scmp.eq.s32.totalorder %s22, 0
      %p162 = por %p160, %p161
      %p163 = scmp.ne.s32.totalorder %s151, %s152
      %p164 = scmp.eq.s32.totalorder %s23, 1
      %p165 = por %p163, %p164
      %p167 = scmp.ne.s32.totalorder %s152, %s166
      %p168 = scmp.eq.s32.totalorder %s23, 0
      %p169 = por %p167, %p168
      %s171 = sadd.s32 %s170, 1
      %p174 = scmp.eq.s32.totalorder %s17, 1
      %p175 = scmp.ne.s32.totalorder %s170, %s172
      %p176 = scmp.eq.s32.totalorder %s17, 0
      %p177 = por %p175, %p176
      %p178 = scmp.ne.s32.totalorder %s170, %s172
      %p179 = scmp.eq.s32.totalorder %s22, 1
      %p180 = por %p178, %p179
      %p181 = scmp.ne.s32.totalorder %s172, %s173
      %p182 = scmp.eq.s32.totalorder %s22, 0
      %p183 = por %p181, %p182
      %p184 = scmp.ne.s32.totalorder %s172, %s173
      %p185 = scmp.eq.s32.totalorder %s23, 1
      %p186 = por %p184, %p185
      %p188 = scmp.ne.s32.totalorder %s173, %s187
      %p189 = scmp.eq.s32.totalorder %s23, 0
      %p190 = por %p188, %p189
      %s192 = sadd.s32 %s191, 1
      %p195 = scmp.eq.s32.totalorder %s17, 1
      %p196 = scmp.ne.s32.totalorder %s191, %s193
      %p197 = scmp.eq.s32.totalorder %s17, 0
      %p198 = por %p196, %p197
      %p199 = scmp.ne.s32.totalorder %s191, %s193
      %p200 = scmp.eq.s32.totalorder %s22, 1
      %p201 = por %p199, %p200
      %p202 = scmp.ne.s32.totalorder %s193, %s194
      %p203 = scmp.eq.s32.totalorder %s22, 0
      %p204 = por %p202, %p203
      %p205 = scmp.ne.s32.totalorder %s193, %s194
      %p206 = scmp.eq.s32.totalorder %s23, 1
      %p207 = por %p205, %p206
      %p209 = scmp.ne.s32.totalorder %s194, %s208
      %p210 = scmp.eq.s32.totalorder %s23, 0
      %p211 = por %p209, %p210
      %s213 = sadd.s32 %s212, 1
      %p216 = scmp.eq.s32.totalorder %s17, 1
      %p217 = scmp.ne.s32.totalorder %s212, %s214
      %p218 = scmp.eq.s32.totalorder %s17, 0
      %p219 = por %p217, %p218
      %p220 = scmp.ne.s32.totalorder %s212, %s214
      %p221 = scmp.eq.s32.totalorder %s22, 1
      %p222 = por %p220, %p221
      %p223 = scmp.ne.s32.totalorder %s214, %s215
      %p224 = scmp.eq.s32.totalorder %s22, 0
      %p225 = por %p223, %p224
      %p226 = scmp.ne.s32.totalorder %s214, %s215
      %p227 = scmp.eq.s32.totalorder %s23, 1
      %p228 = por %p226, %p227
      %p230 = scmp.ne.s32.totalorder %s215, %s229
      %p231 = scmp.eq.s32.totalorder %s23, 0
      %p232 = por %p230, %p231
      %s233 = ssub.s32 %s24, %s36
      %s234 = ssub.s32 %s25, %s32
      %s235 = sor.u32 %s233, %s234
      %p236 = scmp.eq.s32.totalorder %s235, 0
      %s238 = sadd.s32 %s237, 1
      %s239 = scalar_select %p236, %s237, %s238
      %p242 = pneg %p236
      %p243 = scmp.eq.s32.totalorder %s17, 1
      %p244 = por %p242, %p243
      %p245 = scmp.ne.s32.totalorder %s237, %s240
      %p246 = scmp.eq.s32.totalorder %s17, 0
      %p247 = por %p245, %p246
      %p248 = scmp.ne.s32.totalorder %s237, %s240
      %p249 = scmp.eq.s32.totalorder %s22, 1
      %p250 = por %p248, %p249
      %p251 = scmp.ne.s32.totalorder %s240, %s241
      %p252 = scmp.eq.s32.totalorder %s22, 0
      %p253 = por %p251, %p252
      %p254 = scmp.ne.s32.totalorder %s240, %s241
      %p255 = scmp.eq.s32.totalorder %s23, 1
      %p256 = por %p254, %p255
      %p258 = scmp.ne.s32.totalorder %s241, %s257
      %p259 = scmp.eq.s32.totalorder %s23, 0
      %p260 = por %p258, %p259
      %p261 = scmp.le.s32.totalorder 1, %s17
      %p262 = scmp.lt.s32.totalorder %s17, 3
      %p263 = pnand %p261, %p262
      %p264 = pneg %p263
      // Predicated region
      $region9: #{tpu_custom_call.1} parent=5 // pred_check
        _
      $region10: #{tpu_custom_call.1} parent=5 // pred_check_branch
        %266 = sbr.rel (%p263) target = $region12
      $region11: #{tpu_custom_call.1} parent=5 // pred_region
        %s267 = ssub.s32 %s17, 1
        // Predicated region
        $region13: #{tpu_custom_call.1} parent=11 // pred_check
          %p268 = pneg %p162
        $region14: #{tpu_custom_call.1} parent=11 // pred_check_branch
          %270 = sbr.rel (%p268) target = $region16
        $region15: #{tpu_custom_call.1} parent=11 // pred_region
          _
        $region16: #{tpu_custom_call.1} parent=11 // pred_fallthru
          _
        // Predicated region
        $region17: #{tpu_custom_call.1} parent=11 // pred_check
          %p271 = pneg %p183
        $region18: #{tpu_custom_call.1} parent=11 // pred_check_branch
          %273 = sbr.rel (%p271) target = $region20
        $region19: #{tpu_custom_call.1} parent=11 // pred_region
          _
        $region20: #{tpu_custom_call.1} parent=11 // pred_fallthru
          _
        // Predicated region
        $region21: #{tpu_custom_call.1} parent=11 // pred_check
          %p274 = pneg %p204
        $region22: #{tpu_custom_call.1} parent=11 // pred_check_branch
          %276 = sbr.rel (%p274) target = $region24
        $region23: #{tpu_custom_call.1} parent=11 // pred_region
          _
        $region24: #{tpu_custom_call.1} parent=11 // pred_fallthru
          _
        // Predicated region
        $region25: #{tpu_custom_call.1} parent=11 // pred_check
          %p277 = pneg %p225
        $region26: #{tpu_custom_call.1} parent=11 // pred_check_branch
          %279 = sbr.rel (%p277) target = $region28
        $region27: #{tpu_custom_call.1} parent=11 // pred_region
          _
        $region28: #{tpu_custom_call.1} parent=11 // pred_fallthru
          _
      $region12: #{tpu_custom_call.1} parent=5 // pred_fallthru
        _
      %p280 = scmp.lt.s32.totalorder %s17, 2
      // Predicated region
      $region29: #{tpu_custom_call.1} parent=5 // pred_check
        %p281 = pneg %p280
      $region30: #{tpu_custom_call.1} parent=5 // pred_check_branch
        %283 = sbr.rel (%p281) target = $region32
      $region31: #{tpu_custom_call.1} parent=5 // pred_region
        // Predicated region
        $region33: #{tpu_custom_call.1} parent=31 // pred_check
          %p284 = pneg %p51
        $region34: #{tpu_custom_call.1} parent=31 // pred_check_branch
          %286 = sbr.rel (%p284) target = $region36
        $region35: #{tpu_custom_call.1} parent=31 // pred_region
          %p287 = scmp.lt.s32.totalorder %s24, 1
          %s288 = scalar_select %p287, %s24, 1
          %p289 = scmp.lt.s32.totalorder %s25, 0
          %s290 = scalar_select %p289, %s25, 0
          %s291 = smul.addr %s290, 18
          %s292 = smul.addr %s288, 18
          %s293 = sadd.s32 %s291, %s292
          %s294 = smul.addr %s293, 4
          %s295 = scalar_lea.vmem %s0, %s294
        $region36: #{tpu_custom_call.1} parent=31 // pred_fallthru
          _
        // Predicated region
        $region37: #{tpu_custom_call.1} parent=31 // pred_check
          %p296 = pneg %p79
        $region38: #{tpu_custom_call.1} parent=31 // pred_check_branch
          %298 = sbr.rel (%p296) target = $region40
        $region39: #{tpu_custom_call.1} parent=31 // pred_region
          %p299 = scmp.lt.s32.totalorder %s24, 1
          %s300 = scalar_select %p299, %s24, 1
          %p301 = scmp.lt.s32.totalorder %s25, 0
          %s302 = scalar_select %p301, %s25, 0
          %s303 = smul.addr %s302, 9
          %s304 = smul.addr %s300, 9
          %s305 = sadd.s32 %s303, %s304
          %s306 = smul.addr %s305, 4
          %s307 = scalar_lea.vmem %s1, %s306
        $region40: #{tpu_custom_call.1} parent=31 // pred_fallthru
          _
        // Predicated region
        $region41: #{tpu_custom_call.1} parent=31 // pred_check
          %p308 = pneg %p107
        $region42: #{tpu_custom_call.1} parent=31 // pred_check_branch
          %310 = sbr.rel (%p308) target = $region44
        $region43: #{tpu_custom_call.1} parent=31 // pred_region
          %s311 = smul.u32 8, %s25
          %p312 = scmp.lt.s32.totalorder %s24, 1
          %s313 = scalar_select %p312, %s24, 1
          %p314 = scmp.lt.s32.totalorder %s311, 7
          %s315 = scalar_select %p314, %s311, 7
          %s316 = smul.addr %s315, 2
          %s317 = smul.addr %s313, 16
          %s318 = sadd.s32 %s316, %s317
          %s319 = smul.addr %s318, 4
          %s320 = scalar_lea.vmem %s2, %s319
          %s321 = smul.u32 8, %s25
        $region44: #{tpu_custom_call.1} parent=31 // pred_fallthru
          _
        // Predicated region
        $region45: #{tpu_custom_call.1} parent=31 // pred_check
          %p322 = pneg %p135
        $region46: #{tpu_custom_call.1} parent=31 // pred_check_branch
          %324 = sbr.rel (%p322) target = $region48
        $region47: #{tpu_custom_call.1} parent=31 // pred_region
          %s325 = smul.u32 8, %s25
          %p326 = scmp.lt.s32.totalorder %s24, 1
          %s327 = scalar_select %p326, %s24, 1
          %p328 = scmp.lt.s32.totalorder %s325, 7
          %s329 = scalar_select %p328, %s325, 7
          %s330 = smul.addr %s327, 8
          %s331 = sadd.s32 %s329, %s330
          %s332 = smul.addr %s331, 4
          %s333 = scalar_lea.vmem %s3, %s332
          %s334 = smul.u32 8, %s25
        $region48: #{tpu_custom_call.1} parent=31 // pred_fallthru
          _
      $region32: #{tpu_custom_call.1} parent=5 // pred_fallthru
        _
      %p335 = scmp.le.s32.totalorder 1, %s17
      %p336 = scmp.lt.s32.totalorder %s17, 3
      %p337 = pnand %p335, %p336
      %p338 = pneg %p337
      // Predicated region
      $region49: #{tpu_custom_call.1} parent=5 // pred_check
        _
      $region50: #{tpu_custom_call.1} parent=5 // pred_check_branch
        %340 = sbr.rel (%p337) target = $region52
      $region51: #{tpu_custom_call.1} parent=5 // pred_region
        %s341 = ssub.s32 %s17, 1
        %p342 = scmp.lt.s32.totalorder %s26, 1
        %s343 = scalar_select %p342, %s26, 1
        %p344 = scmp.lt.s32.totalorder %s27, 0
        %s345 = scalar_select %p344, %s27, 0
        %s346 = smul.addr %s345, 18
        %s347 = smul.addr %s343, 18
        %s348 = sadd.s32 %s346, %s347
        %s349 = smul.addr %s348, 4
        %s350 = scalar_lea.vmem %s0, %s349
        %p351 = pneg %p57
        %p352 = pneg %p54
        %p353 = scmp.lt.s32.totalorder %s26, 1
        %s354 = scalar_select %p353, %s26, 1
        %p355 = scmp.lt.s32.totalorder %s27, 0
        %s356 = scalar_select %p355, %s27, 0
        %s357 = smul.addr %s356, 9
        %s358 = smul.addr %s354, 9
        %s359 = sadd.s32 %s357, %s358
        %s360 = smul.addr %s359, 4
        %s361 = scalar_lea.vmem %s1, %s360
        %p362 = pneg %p85
        %p363 = pneg %p82
        %s364 = smul.u32 8, %s27
        %p365 = scmp.lt.s32.totalorder %s26, 1
        %s366 = scalar_select %p365, %s26, 1
        %p367 = scmp.lt.s32.totalorder %s364, 7
        %s368 = scalar_select %p367, %s364, 7
        %s369 = smul.addr %s368, 2
        %s370 = smul.addr %s366, 16
        %s371 = sadd.s32 %s369, %s370
        %s372 = smul.addr %s371, 4
        %s373 = scalar_lea.vmem %s2, %s372
        %p374 = pneg %p113
        %p375 = pneg %p110
        %s376 = smul.u32 8, %s27
        %p377 = scmp.lt.s32.totalorder %s26, 1
        %s378 = scalar_select %p377, %s26, 1
        %p379 = scmp.lt.s32.totalorder %s376, 7
        %s380 = scalar_select %p379, %s376, 7
        %s381 = smul.addr %s378, 8
        %s382 = sadd.s32 %s380, %s381
        %s383 = smul.addr %s382, 4
        %s384 = scalar_lea.vmem %s3, %s383
        %p385 = pneg %p141
        %p386 = pneg %p138
        %p387 = pneg %p162
        %p388 = pneg %p159
        %p389 = pneg %p183
        %p390 = pneg %p180
        %p391 = pneg %p204
        %p392 = pneg %p201
        %p393 = pneg %p225
        %p394 = pneg %p222
        %p395 = pneg %p253
        %p396 = pneg %p250
        %s397 = sand.u32 %s240, 1
        %s398 = scalar_lea.sflag [#allocation4], %s397
        %s399 = sand.u32 %s240, 1
        %s400 = smul.addr %s399, 64
        %s401 = scalar_lea.vmem [#allocation3], %s400
        %p402 = scmp.lt.s32.totalorder %s26, 1
        %s403 = scalar_select %p402, %s26, 1
        %p404 = scmp.lt.s32.totalorder %s27, 0
        %s405 = scalar_select %p404, %s27, 0
        %s406 = smul.addr %s405, 18
        %s407 = smul.addr %s403, 18
        %s408 = sadd.s32 %s406, %s407
        %s409 = smul.addr %s408, 4
        %s410 = scalar_lea.vmem %s0, %s409
        %p411 = scmp.lt.s32.totalorder %s26, 1
        %s412 = scalar_select %p411, %s26, 1
        %p413 = scmp.lt.s32.totalorder %s27, 0
        %s414 = scalar_select %p413, %s27, 0
        %s415 = smul.addr %s414, 9
        %s416 = smul.addr %s412, 9
        %s417 = sadd.s32 %s415, %s416
        %s418 = smul.addr %s417, 4
        %s419 = scalar_lea.vmem %s1, %s418
        %s420 = smul.u32 8, %s27
        %p421 = scmp.lt.s32.totalorder %s26, 1
        %s422 = scalar_select %p421, %s26, 1
        %p423 = scmp.lt.s32.totalorder %s420, 7
        %s424 = scalar_select %p423, %s420, 7
        %s425 = smul.addr %s424, 2
        %s426 = smul.addr %s422, 16
        %s427 = sadd.s32 %s425, %s426
        %s428 = smul.addr %s427, 4
        %s429 = scalar_lea.vmem %s2, %s428
        %s430 = smul.u32 8, %s27
        %s431 = smul.u32 8, %s27
        %p432 = scmp.lt.s32.totalorder %s26, 1
        %s433 = scalar_select %p432, %s26, 1
        %p434 = scmp.lt.s32.totalorder %s431, 7
        %s435 = scalar_select %p434, %s431, 7
        %s436 = smul.addr %s433, 8
        %s437 = sadd.s32 %s435, %s436
        %s438 = smul.addr %s437, 4
        %s439 = scalar_lea.vmem %s3, %s438
        %s440 = smul.u32 8, %s27
        %s441 = smul.u32 8, %s27
        %v443 = vld [vmem:[%s410] sm:$0xf]
        %v444 = vld [vmem:[%s410 + $0x8] sm:$0xf]
        %v445 = vld [vmem:[%s410 + $0x10] sm:$0xf]
        %v446 = vld [vmem:[%s410 + $0x18] sm:$0xf]
        %v447 = vld [vmem:[%s410 + $0x20] sm:$0xf]
        %v448 = vld [vmem:[%s410 + $0x28] sm:$0xf]
        %v449 = vld [vmem:[%s410 + $0x30] sm:$0xf]
        %v450 = vld [vmem:[%s410 + $0x38] sm:$0xf]
        %v451 = vld [vmem:[%s419] sm:$0xf]
        %v452 = vld [vmem:[%s419 + $0x4] sm:$0xf]
        %v453 = vld [vmem:[%s419 + $0x8] sm:$0xf]
        %v454 = vld [vmem:[%s419 + $0xc] sm:$0xf]
        %v455 = vld [vmem:[%s419 + $0x10] sm:$0xf]
        %v456 = vld [vmem:[%s419 + $0x14] sm:$0xf]
        %v457 = vld [vmem:[%s419 + $0x18] sm:$0xf]
        %v458 = vld [vmem:[%s419 + $0x1c] sm:$0xf]
        %v459 = vld [vmem:[%s410 + $0x4] sm:$0x1]
        %v460 = vld [vmem:[%s410 + $0xc] sm:$0x1]
        %v461 = vld [vmem:[%s410 + $0x14] sm:$0x1]
        %v462 = vld [vmem:[%s410 + $0x1c] sm:$0x1]
        %v463 = vld [vmem:[%s410 + $0x24] sm:$0x1]
        %v464 = vld [vmem:[%s410 + $0x2c] sm:$0x1]
        %v465 = vld [vmem:[%s410 + $0x34] sm:$0x1]
        %v466 = vld [vmem:[%s410 + $0x3c] sm:$0x1]
        %v467 = vld [vmem:[%s429] sm:$0xf]
        %v468 = vld [vmem:[%s429 + $0x8] sm:$0xf]
        %v469 = vld [vmem:[%s429 + $0x10] sm:$0xf]
        %v470 = vld [vmem:[%s429 + $0x18] sm:$0xf]
        %v471 = vld [vmem:[%s429 + $0x20] sm:$0xf]
        %v472 = vld [vmem:[%s429 + $0x28] sm:$0xf]
        %v473 = vld [vmem:[%s429 + $0x30] sm:$0xf]
        %v474 = vld [vmem:[%s429 + $0x38] sm:$0xf]
        %v475 = vld [vmem:[%s439] sm:$0xf]
        %v476 = vld [vmem:[%s439 + $0x4] sm:$0xf]
        %v477 = vld [vmem:[%s439 + $0x8] sm:$0xf]
        %v478 = vld [vmem:[%s439 + $0xc] sm:$0xf]
        %v479 = vld [vmem:[%s439 + $0x10] sm:$0xf]
        %v480 = vld [vmem:[%s439 + $0x14] sm:$0xf]
        %v481 = vld [vmem:[%s439 + $0x18] sm:$0xf]
        %v482 = vld [vmem:[%s439 + $0x1c] sm:$0xf]
        %v483 = vld [vmem:[%s429 + $0x4] sm:$0x1]
        %v484 = vld [vmem:[%s429 + $0xc] sm:$0x1]
        %v485 = vld [vmem:[%s429 + $0x14] sm:$0x1]
        %v486 = vld [vmem:[%s429 + $0x1c] sm:$0x1]
        %v487 = vld [vmem:[%s429 + $0x24] sm:$0x1]
        %v488 = vld [vmem:[%s429 + $0x2c] sm:$0x1]
        %v489 = vld [vmem:[%s429 + $0x34] sm:$0x1]
        %v490 = vld [vmem:[%s429 + $0x3c] sm:$0x1]
        %s491 = scalar_lea.vmem %s410, 8
        %v492 = vld [vmem:[%s491] sm:$0xf]
        %v493 = vld [vmem:[%s491 + $0x8] sm:$0xf]
        %v494 = vld [vmem:[%s491 + $0x10] sm:$0xf]
        %v495 = vld [vmem:[%s491 + $0x18] sm:$0xf]
        %v496 = vld [vmem:[%s491 + $0x20] sm:$0xf]
        %v497 = vld [vmem:[%s491 + $0x28] sm:$0xf]
        %v498 = vld [vmem:[%s491 + $0x30] sm:$0xf]
        %v499 = vld [vmem:[%s491 + $0x38] sm:$0xf]
        %s500 = scalar_lea.vmem %s419, 4
        %v501 = vld [vmem:[%s500] sm:$0xf]
        %v502 = vld [vmem:[%s500 + $0x4] sm:$0xf]
        %v503 = vld [vmem:[%s500 + $0x8] sm:$0xf]
        %v504 = vld [vmem:[%s500 + $0xc] sm:$0xf]
        %v505 = vld [vmem:[%s500 + $0x10] sm:$0xf]
        %v506 = vld [vmem:[%s500 + $0x14] sm:$0xf]
        %v507 = vld [vmem:[%s500 + $0x18] sm:$0xf]
        %v508 = vld [vmem:[%s500 + $0x1c] sm:$0xf]
        %v509 = vld [vmem:[%s491 + $0x4] sm:$0x1]
        %v510 = vld [vmem:[%s491 + $0xc] sm:$0x1]
        %v511 = vld [vmem:[%s491 + $0x14] sm:$0x1]
        %v512 = vld [vmem:[%s491 + $0x1c] sm:$0x1]
        %v513 = vld [vmem:[%s491 + $0x24] sm:$0x1]
        %v514 = vld [vmem:[%s491 + $0x2c] sm:$0x1]
        %v515 = vld [vmem:[%s491 + $0x34] sm:$0x1]
        %v516 = vld [vmem:[%s491 + $0x3c] sm:$0x1]
        %vm517 = vcmask 27648
        %518 = vst.msk [vmem:[#allocation2] sm:$0xf] %vm517, %v443
        %519 = vst.msk [vmem:[#allocation2 + $0x4] sm:$0xf] %vm517, %v444
        %520 = vst.msk [vmem:[#allocation2 + $0x8] sm:$0xf] %vm517, %v445
        %521 = vst.msk [vmem:[#allocation2 + $0xc] sm:$0xf] %vm517, %v446
        %522 = vst.msk [vmem:[#allocation2 + $0x10] sm:$0xf] %vm517, %v447
        %523 = vst.msk [vmem:[#allocation2 + $0x14] sm:$0xf] %vm517, %v448
        %524 = vst.msk [vmem:[#allocation2 + $0x18] sm:$0xf] %vm517, %v449
        %525 = vst.msk [vmem:[#allocation2 + $0x1c] sm:$0xf] %vm517, %v450
        %534 = vrot.lane.b32.xlu0 %v451, 4
        %v535 = vpop.permute.xlu0 %534
        %536 = vrot.lane.b32.xlu0 %v452, 4
        %v537 = vpop.permute.xlu0 %536
        %538 = vrot.lane.b32.xlu0 %v453, 4
        %v539 = vpop.permute.xlu0 %538
        %540 = vrot.lane.b32.xlu0 %v454, 4
        %v541 = vpop.permute.xlu0 %540
        %542 = vrot.lane.b32.xlu0 %v455, 4
        %v543 = vpop.permute.xlu0 %542
        %544 = vrot.lane.b32.xlu0 %v456, 4
        %v545 = vpop.permute.xlu0 %544
        %546 = vrot.lane.b32.xlu0 %v457, 4
        %v547 = vpop.permute.xlu0 %546
        %548 = vrot.lane.b32.xlu0 %v458, 4
        %v549 = vpop.permute.xlu0 %548
        %vm558 = vcmask 60448
        %559 = vst.msk [vmem:[#allocation2] sm:$0xf] %vm558, %v535
        %560 = vst.msk [vmem:[#allocation2 + $0x4] sm:$0xf] %vm558, %v537
        %561 = vst.msk [vmem:[#allocation2 + $0x8] sm:$0xf] %vm558, %v539
        %562 = vst.msk [vmem:[#allocation2 + $0xc] sm:$0xf] %vm558, %v541
        %563 = vst.msk [vmem:[#allocation2 + $0x10] sm:$0xf] %vm558, %v543
        %564 = vst.msk [vmem:[#allocation2 + $0x14] sm:$0xf] %vm558, %v545
        %565 = vst.msk [vmem:[#allocation2 + $0x18] sm:$0xf] %vm558, %v547
        %566 = vst.msk [vmem:[#allocation2 + $0x1c] sm:$0xf] %vm558, %v549
        %vm567 = vsmask.f32 3328
        %vm568 = vsmask.f32 7440
        %vm569 = vmor %vm567, %vm568
        %v571 = vshrl.u32 %v443, 16
        %v573 = vrot.slane %v571, 4
        %v574 = vshll.u32 %v443, 16
        %v576 = vrot.slane %v574, 5
        %v577 = vor.u32 %v573, %v576
        %v578 = vrot.slane %v577, 4
        %v580 = vshll.u32 %v459, 16
        %v582 = vrot.slane %v580, 5
        %v583 = vsel %vm569, %v578, %v582
        %v585 = vshrl.u32 %v444, 16
        %v587 = vrot.slane %v585, 4
        %v588 = vshll.u32 %v444, 16
        %v590 = vrot.slane %v588, 5
        %v591 = vor.u32 %v587, %v590
        %v592 = vrot.slane %v591, 4
        %v594 = vshll.u32 %v460, 16
        %v596 = vrot.slane %v594, 5
        %v597 = vsel %vm569, %v592, %v596
        %v599 = vshrl.u32 %v445, 16
        %v601 = vrot.slane %v599, 4
        %v602 = vshll.u32 %v445, 16
        %v604 = vrot.slane %v602, 5
        %v605 = vor.u32 %v601, %v604
        %v606 = vrot.slane %v605, 4
        %v608 = vshll.u32 %v461, 16
        %v610 = vrot.slane %v608, 5
        %v611 = vsel %vm569, %v606, %v610
        %v613 = vshrl.u32 %v446, 16
        %v615 = vrot.slane %v613, 4
        %v616 = vshll.u32 %v446, 16
        %v618 = vrot.slane %v616, 5
        %v619 = vor.u32 %v615, %v618
        %v620 = vrot.slane %v619, 4
        %v622 = vshll.u32 %v462, 16
        %v624 = vrot.slane %v622, 5
        %v625 = vsel %vm569, %v620, %v624
        %v627 = vshrl.u32 %v447, 16
        %v629 = vrot.slane %v627, 4
        %v630 = vshll.u32 %v447, 16
        %v632 = vrot.slane %v630, 5
        %v633 = vor.u32 %v629, %v632
        %v634 = vrot.slane %v633, 4
        %v636 = vshll.u32 %v463, 16
        %v638 = vrot.slane %v636, 5
        %v639 = vsel %vm569, %v634, %v638
        %v641 = vshrl.u32 %v448, 16
        %v643 = vrot.slane %v641, 4
        %v644 = vshll.u32 %v448, 16
        %v646 = vrot.slane %v644, 5
        %v647 = vor.u32 %v643, %v646
        %v648 = vrot.slane %v647, 4
        %v650 = vshll.u32 %v464, 16
        %v652 = vrot.slane %v650, 5
        %v653 = vsel %vm569, %v648, %v652
        %v655 = vshrl.u32 %v449, 16
        %v657 = vrot.slane %v655, 4
        %v658 = vshll.u32 %v449, 16
        %v660 = vrot.slane %v658, 5
        %v661 = vor.u32 %v657, %v660
        %v662 = vrot.slane %v661, 4
        %v664 = vshll.u32 %v465, 16
        %v666 = vrot.slane %v664, 5
        %v667 = vsel %vm569, %v662, %v666
        %v669 = vshrl.u32 %v450, 16
        %v671 = vrot.slane %v669, 4
        %v672 = vshll.u32 %v450, 16
        %v674 = vrot.slane %v672, 5
        %v675 = vor.u32 %v671, %v674
        %v676 = vrot.slane %v675, 4
        %v678 = vshll.u32 %v466, 16
        %v680 = vrot.slane %v678, 5
        %v681 = vsel %vm569, %v676, %v680
        %682 = vrot.lane.b32.xlu0 %v583, 8
        %v683 = vpop.permute.xlu0 %682
        %684 = vrot.lane.b32.xlu0 %v597, 8
        %v685 = vpop.permute.xlu0 %684
        %686 = vrot.lane.b32.xlu0 %v611, 8
        %v687 = vpop.permute.xlu0 %686
        %688 = vrot.lane.b32.xlu0 %v625, 8
        %v689 = vpop.permute.xlu0 %688
        %690 = vrot.lane.b32.xlu0 %v639, 8
        %v691 = vpop.permute.xlu0 %690
        %692 = vrot.lane.b32.xlu0 %v653, 8
        %v693 = vpop.permute.xlu0 %692
        %694 = vrot.lane.b32.xlu0 %v667, 8
        %v695 = vpop.permute.xlu0 %694
        %696 = vrot.lane.b32.xlu0 %v681, 8
        %v697 = vpop.permute.xlu0 %696
        %vm706 = vcmask 93248
        %707 = vst.msk [vmem:[#allocation2] sm:$0xf] %vm706, %v683
        %708 = vst.msk [vmem:[#allocation2 + $0x4] sm:$0xf] %vm706, %v685
        %709 = vst.msk [vmem:[#allocation2 + $0x8] sm:$0xf] %vm706, %v687
        %710 = vst.msk [vmem:[#allocation2 + $0xc] sm:$0xf] %vm706, %v689
        %711 = vst.msk [vmem:[#allocation2 + $0x10] sm:$0xf] %vm706, %v691
        %712 = vst.msk [vmem:[#allocation2 + $0x14] sm:$0xf] %vm706, %v693
        %713 = vst.msk [vmem:[#allocation2 + $0x18] sm:$0xf] %vm706, %v695
        %714 = vst.msk [vmem:[#allocation2 + $0x1c] sm:$0xf] %vm706, %v697
        %723 = vrot.lane.b32.xlu0 %v467, 12
        %v724 = vpop.permute.xlu0 %723
        %725 = vrot.lane.b32.xlu0 %v468, 12
        %v726 = vpop.permute.xlu0 %725
        %727 = vrot.lane.b32.xlu0 %v469, 12
        %v728 = vpop.permute.xlu0 %727
        %729 = vrot.lane.b32.xlu0 %v470, 12
        %v730 = vpop.permute.xlu0 %729
        %731 = vrot.lane.b32.xlu0 %v471, 12
        %v732 = vpop.permute.xlu0 %731
        %733 = vrot.lane.b32.xlu0 %v472, 12
        %v734 = vpop.permute.xlu0 %733
        %735 = vrot.lane.b32.xlu0 %v473, 12
        %v736 = vpop.permute.xlu0 %735
        %737 = vrot.lane.b32.xlu0 %v474, 12
        %v738 = vpop.permute.xlu0 %737
        %vm747 = vcmask 126048
        %748 = vst.msk [vmem:[#allocation2] sm:$0xf] %vm747, %v724
        %749 = vst.msk [vmem:[#allocation2 + $0x4] sm:$0xf] %vm747, %v726
        %750 = vst.msk [vmem:[#allocation2 + $0x8] sm:$0xf] %vm747, %v728
        %751 = vst.msk [vmem:[#allocation2 + $0xc] sm:$0xf] %vm747, %v730
        %752 = vst.msk [vmem:[#allocation2 + $0x10] sm:$0xf] %vm747, %v732
        %753 = vst.msk [vmem:[#allocation2 + $0x14] sm:$0xf] %vm747, %v734
        %754 = vst.msk [vmem:[#allocation2 + $0x18] sm:$0xf] %vm747, %v736
        %755 = vst.msk [vmem:[#allocation2 + $0x1c] sm:$0xf] %vm747, %v738
        %764 = vrot.lane.b32.xlu0 %v475, 16
        %v765 = vpop.permute.xlu0 %764
        %766 = vrot.lane.b32.xlu0 %v476, 16
        %v767 = vpop.permute.xlu0 %766
        %768 = vrot.lane.b32.xlu0 %v477, 16
        %v769 = vpop.permute.xlu0 %768
        %770 = vrot.lane.b32.xlu0 %v478, 16
        %v771 = vpop.permute.xlu0 %770
        %772 = vrot.lane.b32.xlu0 %v479, 16
        %v773 = vpop.permute.xlu0 %772
        %774 = vrot.lane.b32.xlu0 %v480, 16
        %v775 = vpop.permute.xlu0 %774
        %776 = vrot.lane.b32.xlu0 %v481, 16
        %v777 = vpop.permute.xlu0 %776
        %778 = vrot.lane.b32.xlu0 %v482, 16
        %v779 = vpop.permute.xlu0 %778
        %vm788 = vcmask 158848
        %789 = vst.msk [vmem:[#allocation2] sm:$0xf] %vm788, %v765
        %790 = vst.msk [vmem:[#allocation2 + $0x4] sm:$0xf] %vm788, %v767
        %791 = vst.msk [vmem:[#allocation2 + $0x8] sm:$0xf] %vm788, %v769
        %792 = vst.msk [vmem:[#allocation2 + $0xc] sm:$0xf] %vm788, %v771
        %793 = vst.msk [vmem:[#allocation2 + $0x10] sm:$0xf] %vm788, %v773
        %794 = vst.msk [vmem:[#allocation2 + $0x14] sm:$0xf] %vm788, %v775
        %795 = vst.msk [vmem:[#allocation2 + $0x18] sm:$0xf] %vm788, %v777
        %796 = vst.msk [vmem:[#allocation2 + $0x1c] sm:$0xf] %vm788, %v779
        %v798 = vshrl.u32 %v467, 16
        %v800 = vrot.slane %v798, 4
        %v801 = vshll.u32 %v467, 16
        %v803 = vrot.slane %v801, 5
        %v804 = vor.u32 %v800, %v803
        %v805 = vrot.slane %v804, 4
        %v807 = vshll.u32 %v483, 16
        %v809 = vrot.slane %v807, 5
        %v810 = vsel %vm569, %v805, %v809
        %v812 = vshrl.u32 %v468, 16
        %v814 = vrot.slane %v812, 4
        %v815 = vshll.u32 %v468, 16
        %v817 = vrot.slane %v815, 5
        %v818 = vor.u32 %v814, %v817
        %v819 = vrot.slane %v818, 4
        %v821 = vshll.u32 %v484, 16
        %v823 = vrot.slane %v821, 5
        %v824 = vsel %vm569, %v819, %v823
        %v826 = vshrl.u32 %v469, 16
        %v828 = vrot.slane %v826, 4
        %v829 = vshll.u32 %v469, 16
        %v831 = vrot.slane %v829, 5
        %v832 = vor.u32 %v828, %v831
        %v833 = vrot.slane %v832, 4
        %v835 = vshll.u32 %v485, 16
        %v837 = vrot.slane %v835, 5
        %v838 = vsel %vm569, %v833, %v837
        %v840 = vshrl.u32 %v470, 16
        %v842 = vrot.slane %v840, 4
        %v843 = vshll.u32 %v470, 16
        %v845 = vrot.slane %v843, 5
        %v846 = vor.u32 %v842, %v845
        %v847 = vrot.slane %v846, 4
        %v849 = vshll.u32 %v486, 16
        %v851 = vrot.slane %v849, 5
        %v852 = vsel %vm569, %v847, %v851
        %v854 = vshrl.u32 %v471, 16
        %v856 = vrot.slane %v854, 4
        %v857 = vshll.u32 %v471, 16
        %v859 = vrot.slane %v857, 5
        %v860 = vor.u32 %v856, %v859
        %v861 = vrot.slane %v860, 4
        %v863 = vshll.u32 %v487, 16
        %v865 = vrot.slane %v863, 5
        %v866 = vsel %vm569, %v861, %v865
        %v868 = vshrl.u32 %v472, 16
        %v870 = vrot.slane %v868, 4
        %v871 = vshll.u32 %v472, 16
        %v873 = vrot.slane %v871, 5
        %v874 = vor.u32 %v870, %v873
        %v875 = vrot.slane %v874, 4
        %v877 = vshll.u32 %v488, 16
        %v879 = vrot.slane %v877, 5
        %v880 = vsel %vm569, %v875, %v879
        %v882 = vshrl.u32 %v473, 16
        %v884 = vrot.slane %v882, 4
        %v885 = vshll.u32 %v473, 16
        %v887 = vrot.slane %v885, 5
        %v888 = vor.u32 %v884, %v887
        %v889 = vrot.slane %v888, 4
        %v891 = vshll.u32 %v489, 16
        %v893 = vrot.slane %v891, 5
        %v894 = vsel %vm569, %v889, %v893
        %v896 = vshrl.u32 %v474, 16
        %v898 = vrot.slane %v896, 4
        %v899 = vshll.u32 %v474, 16
        %v901 = vrot.slane %v899, 5
        %v902 = vor.u32 %v898, %v901
        %v903 = vrot.slane %v902, 4
        %v905 = vshll.u32 %v490, 16
        %v907 = vrot.slane %v905, 5
        %v908 = vsel %vm569, %v903, %v907
        %909 = vrot.lane.b32.xlu0 %v810, 20
        %v910 = vpop.permute.xlu0 %909
        %911 = vrot.lane.b32.xlu0 %v824, 20
        %v912 = vpop.permute.xlu0 %911
        %913 = vrot.lane.b32.xlu0 %v838, 20
        %v914 = vpop.permute.xlu0 %913
        %915 = vrot.lane.b32.xlu0 %v852, 20
        %v916 = vpop.permute.xlu0 %915
        %917 = vrot.lane.b32.xlu0 %v866, 20
        %v918 = vpop.permute.xlu0 %917
        %919 = vrot.lane.b32.xlu0 %v880, 20
        %v920 = vpop.permute.xlu0 %919
        %921 = vrot.lane.b32.xlu0 %v894, 20
        %v922 = vpop.permute.xlu0 %921
        %923 = vrot.lane.b32.xlu0 %v908, 20
        %v924 = vpop.permute.xlu0 %923
        %vm933 = vcmask 191648
        %934 = vst.msk [vmem:[#allocation2] sm:$0xf] %vm933, %v910
        %935 = vst.msk [vmem:[#allocation2 + $0x4] sm:$0xf] %vm933, %v912
        %936 = vst.msk [vmem:[#allocation2 + $0x8] sm:$0xf] %vm933, %v914
        %937 = vst.msk [vmem:[#allocation2 + $0xc] sm:$0xf] %vm933, %v916
        %938 = vst.msk [vmem:[#allocation2 + $0x10] sm:$0xf] %vm933, %v918
        %939 = vst.msk [vmem:[#allocation2 + $0x14] sm:$0xf] %vm933, %v920
        %940 = vst.msk [vmem:[#allocation2 + $0x18] sm:$0xf] %vm933, %v922
        %941 = vst.msk [vmem:[#allocation2 + $0x1c] sm:$0xf] %vm933, %v924
        %950 = vrot.lane.b32.xlu0 %v492, 24
        %v951 = vpop.permute.xlu0 %950
        %952 = vrot.lane.b32.xlu0 %v493, 24
        %v953 = vpop.permute.xlu0 %952
        %954 = vrot.lane.b32.xlu0 %v494, 24
        %v955 = vpop.permute.xlu0 %954
        %956 = vrot.lane.b32.xlu0 %v495, 24
        %v957 = vpop.permute.xlu0 %956
        %958 = vrot.lane.b32.xlu0 %v496, 24
        %v959 = vpop.permute.xlu0 %958
        %960 = vrot.lane.b32.xlu0 %v497, 24
        %v961 = vpop.permute.xlu0 %960
        %962 = vrot.lane.b32.xlu0 %v498, 24
        %v963 = vpop.permute.xlu0 %962
        %964 = vrot.lane.b32.xlu0 %v499, 24
        %v965 = vpop.permute.xlu0 %964
        %vm974 = vcmask 224448
        %975 = vst.msk [vmem:[#allocation2] sm:$0xf] %vm974, %v951
        %976 = vst.msk [vmem:[#allocation2 + $0x4] sm:$0xf] %vm974, %v953
        %977 = vst.msk [vmem:[#allocation2 + $0x8] sm:$0xf] %vm974, %v955
        %978 = vst.msk [vmem:[#allocation2 + $0xc] sm:$0xf] %vm974, %v957
        %979 = vst.msk [vmem:[#allocation2 + $0x10] sm:$0xf] %vm974, %v959
        %980 = vst.msk [vmem:[#allocation2 + $0x14] sm:$0xf] %vm974, %v961
        %981 = vst.msk [vmem:[#allocation2 + $0x18] sm:$0xf] %vm974, %v963
        %982 = vst.msk [vmem:[#allocation2 + $0x1c] sm:$0xf] %vm974, %v965
        %991 = vrot.lane.b32.xlu0 %v501, 28
        %v992 = vpop.permute.xlu0 %991
        %993 = vrot.lane.b32.xlu0 %v502, 28
        %v994 = vpop.permute.xlu0 %993
        %995 = vrot.lane.b32.xlu0 %v503, 28
        %v996 = vpop.permute.xlu0 %995
        %997 = vrot.lane.b32.xlu0 %v504, 28
        %v998 = vpop.permute.xlu0 %997
        %999 = vrot.lane.b32.xlu0 %v505, 28
        %v1000 = vpop.permute.xlu0 %999
        %1001 = vrot.lane.b32.xlu0 %v506, 28
        %v1002 = vpop.permute.xlu0 %1001
        %1003 = vrot.lane.b32.xlu0 %v507, 28
        %v1004 = vpop.permute.xlu0 %1003
        %1005 = vrot.lane.b32.xlu0 %v508, 28
        %v1006 = vpop.permute.xlu0 %1005
        %vm1015 = vcmask 257248
        %1016 = vst.msk [vmem:[#allocation2] sm:$0xf] %vm1015, %v992
        %1017 = vst.msk [vmem:[#allocation2 + $0x4] sm:$0xf] %vm1015, %v994
        %1018 = vst.msk [vmem:[#allocation2 + $0x8] sm:$0xf] %vm1015, %v996
        %1019 = vst.msk [vmem:[#allocation2 + $0xc] sm:$0xf] %vm1015, %v998
        %1020 = vst.msk [vmem:[#allocation2 + $0x10] sm:$0xf] %vm1015, %v1000
        %1021 = vst.msk [vmem:[#allocation2 + $0x14] sm:$0xf] %vm1015, %v1002
        %1022 = vst.msk [vmem:[#allocation2 + $0x18] sm:$0xf] %vm1015, %v1004
        %1023 = vst.msk [vmem:[#allocation2 + $0x1c] sm:$0xf] %vm1015, %v1006
        %v1025 = vshrl.u32 %v492, 16
        %v1027 = vrot.slane %v1025, 4
        %v1028 = vshll.u32 %v492, 16
        %v1030 = vrot.slane %v1028, 5
        %v1031 = vor.u32 %v1027, %v1030
        %v1032 = vrot.slane %v1031, 4
        %v1034 = vshll.u32 %v509, 16
        %v1036 = vrot.slane %v1034, 5
        %v1037 = vsel %vm569, %v1032, %v1036
        %v1039 = vshrl.u32 %v493, 16
        %v1041 = vrot.slane %v1039, 4
        %v1042 = vshll.u32 %v493, 16
        %v1044 = vrot.slane %v1042, 5
        %v1045 = vor.u32 %v1041, %v1044
        %v1046 = vrot.slane %v1045, 4
        %v1048 = vshll.u32 %v510, 16
        %v1050 = vrot.slane %v1048, 5
        %v1051 = vsel %vm569, %v1046, %v1050
        %v1053 = vshrl.u32 %v494, 16
        %v1055 = vrot.slane %v1053, 4
        %v1056 = vshll.u32 %v494, 16
        %v1058 = vrot.slane %v1056, 5
        %v1059 = vor.u32 %v1055, %v1058
        %v1060 = vrot.slane %v1059, 4
        %v1062 = vshll.u32 %v511, 16
        %v1064 = vrot.slane %v1062, 5
        %v1065 = vsel %vm569, %v1060, %v1064
        %v1067 = vshrl.u32 %v495, 16
        %v1069 = vrot.slane %v1067, 4
        %v1070 = vshll.u32 %v495, 16
        %v1072 = vrot.slane %v1070, 5
        %v1073 = vor.u32 %v1069, %v1072
        %v1074 = vrot.slane %v1073, 4
        %v1076 = vshll.u32 %v512, 16
        %v1078 = vrot.slane %v1076, 5
        %v1079 = vsel %vm569, %v1074, %v1078
        %v1081 = vshrl.u32 %v496, 16
        %v1083 = vrot.slane %v1081, 4
        %v1084 = vshll.u32 %v496, 16
        %v1086 = vrot.slane %v1084, 5
        %v1087 = vor.u32 %v1083, %v1086
        %v1088 = vrot.slane %v1087, 4
        %v1090 = vshll.u32 %v513, 16
        %v1092 = vrot.slane %v1090, 5
        %v1093 = vsel %vm569, %v1088, %v1092
        %v1095 = vshrl.u32 %v497, 16
        %v1097 = vrot.slane %v1095, 4
        %v1098 = vshll.u32 %v497, 16
        %v1100 = vrot.slane %v1098, 5
        %v1101 = vor.u32 %v1097, %v1100
        %v1102 = vrot.slane %v1101, 4
        %v1104 = vshll.u32 %v514, 16
        %v1106 = vrot.slane %v1104, 5
        %v1107 = vsel %vm569, %v1102, %v1106
        %v1109 = vshrl.u32 %v498, 16
        %v1111 = vrot.slane %v1109, 4
        %v1112 = vshll.u32 %v498, 16
        %v1114 = vrot.slane %v1112, 5
        %v1115 = vor.u32 %v1111, %v1114
        %v1116 = vrot.slane %v1115, 4
        %v1118 = vshll.u32 %v515, 16
        %v1120 = vrot.slane %v1118, 5
        %v1121 = vsel %vm569, %v1116, %v1120
        %v1123 = vshrl.u32 %v499, 16
        %v1125 = vrot.slane %v1123, 4
        %v1126 = vshll.u32 %v499, 16
        %v1128 = vrot.slane %v1126, 5
        %v1129 = vor.u32 %v1125, %v1128
        %v1130 = vrot.slane %v1129, 4
        %v1132 = vshll.u32 %v516, 16
        %v1134 = vrot.slane %v1132, 5
        %v1135 = vsel %vm569, %v1130, %v1134
        %1136 = vrot.lane.b32.xlu0 %v1037, 32
        %v1137 = vpop.permute.xlu0 %1136
        %1138 = vrot.lane.b32.xlu0 %v1051, 32
        %v1139 = vpop.permute.xlu0 %1138
        %1140 = vrot.lane.b32.xlu0 %v1065, 32
        %v1141 = vpop.permute.xlu0 %1140
        %1142 = vrot.lane.b32.xlu0 %v1079, 32
        %v1143 = vpop.permute.xlu0 %1142
        %1144 = vrot.lane.b32.xlu0 %v1093, 32
        %v1145 = vpop.permute.xlu0 %1144
        %1146 = vrot.lane.b32.xlu0 %v1107, 32
        %v1147 = vpop.permute.xlu0 %1146
        %1148 = vrot.lane.b32.xlu0 %v1121, 32
        %v1149 = vpop.permute.xlu0 %1148
        %1150 = vrot.lane.b32.xlu0 %v1135, 32
        %v1151 = vpop.permute.xlu0 %1150
        %vm1160 = vcmask 290048
        %1161 = vst.msk [vmem:[#allocation2] sm:$0xf] %vm1160, %v1137
        %1162 = vst.msk [vmem:[#allocation2 + $0x4] sm:$0xf] %vm1160, %v1139
        %1163 = vst.msk [vmem:[#allocation2 + $0x8] sm:$0xf] %vm1160, %v1141
        %1164 = vst.msk [vmem:[#allocation2 + $0xc] sm:$0xf] %vm1160, %v1143
        %1165 = vst.msk [vmem:[#allocation2 + $0x10] sm:$0xf] %vm1160, %v1145
        %1166 = vst.msk [vmem:[#allocation2 + $0x14] sm:$0xf] %vm1160, %v1147
        %1167 = vst.msk [vmem:[#allocation2 + $0x18] sm:$0xf] %vm1160, %v1149
        %1168 = vst.msk [vmem:[#allocation2 + $0x1c] sm:$0xf] %vm1160, %v1151
        %v1169 = vld [vmem:[#allocation2] sm:$0xf]
        %v1170 = vld [vmem:[#allocation2 + $0x4] sm:$0xf]
        %v1171 = vld [vmem:[#allocation2 + $0x8] sm:$0xf]
        %v1172 = vld [vmem:[#allocation2 + $0xc] sm:$0xf]
        %v1173 = vld [vmem:[#allocation2 + $0x10] sm:$0xf]
        %v1174 = vld [vmem:[#allocation2 + $0x14] sm:$0xf]
        %v1175 = vld [vmem:[#allocation2 + $0x18] sm:$0xf]
        %v1176 = vld [vmem:[#allocation2 + $0x1c] sm:$0xf]
        %v1177 = vld [vmem:[%s4] sm:$0xf]
        %v1178 = vld [vmem:[%s4 + $0x4] sm:$0xf]
        %v1179 = vld [vmem:[%s4 + $0x8] sm:$0xf]
        %v1180 = vld [vmem:[%s4 + $0xc] sm:$0xf]
        %v1181 = vld [vmem:[%s4 + $0x10] sm:$0x3]
        %v1182 = vld [vmem:[%s5] sm:$0x1]
        %v1184 = vperm.slane %v1182, 0
        %v1194 = vunpack.c.l.b16 %v1169
        %v1195 = vunpack.c.l.b16 %v1170
        %v1196 = vunpack.c.l.b16 %v1171
        %v1197 = vunpack.c.l.b16 %v1172
        %v1198 = vunpack.c.l.b16 %v1173
        %v1199 = vunpack.c.l.b16 %v1174
        %v1200 = vunpack.c.l.b16 %v1175
        %v1201 = vunpack.c.l.b16 %v1176
        %v1202 = vpack.c.b16 %v1195, %v1194
        %v1203 = vpack.c.b16 %v1197, %v1196
        %v1204 = vpack.c.b16 %v1199, %v1198
        %v1205 = vpack.c.b16 %v1201, %v1200
        %v1211 = vunpack.c.l.b16 %v1177
        %v1212 = vunpack.c.l.b16 %v1178
        %v1213 = vunpack.c.l.b16 %v1179
        %v1214 = vunpack.c.l.b16 %v1180
        %v1215 = vunpack.c.l.b16 %v1181
        %v1216 = vpack.c.b16 %v1212, %v1211
        %v1217 = vpack.c.b16 %v1214, %v1213
        %v1218 = vpack.c.b16 %v1215, %v1215
        %vm1221 = vcmask 293888
        %v1223 = vsel %vm1221, %v1202, 0
        %v1226 = vsel %vm1221, %v1203, 0
        %v1229 = vsel %vm1221, %v1204, 0
        %v1232 = vsel %vm1221, %v1205, 0
        %vm1234 = vcmask 1041408
        %v1236 = vsel %vm1234, %v1218, 0
        %1238 = vmatpush.bf16.msra.mxu0 0
        %1239 = vmatpush.bf16.msra.mxu0 0
        %1240 = vmatpush.bf16.msra.mxu0 0
        %1241 = vmatpush.bf16.msra.mxu0 0
        %1242 = vmatpush.bf16.msra.mxu0 0
        %1243 = vmatpush.bf16.msra.mxu0 %v1236
        %1244 = vmatpush.bf16.msra.mxu0 %v1217
        %1245 = vmatpush.bf16.msra.mxu0 %v1216
        %1246 = vmatmul.bf16.gmra.mxu0 %v1223
        %v1247 = vpop.f32.mrf.mxu0
        %v1248 = vadd.f32 %v1184, %v1247
        %v1249 = vpop.f32.mrf.mxu0
        %v1250 = vadd.f32 %v1184, %v1249
        %1251 = vmatmul.bf16.gmra.mxu0 %v1226
        %v1252 = vpop.f32.mrf.mxu0
        %v1253 = vadd.f32 %v1184, %v1252
        %v1254 = vpop.f32.mrf.mxu0
        %v1255 = vadd.f32 %v1184, %v1254
        %1256 = vmatmul.bf16.gmra.mxu0 %v1229
        %v1257 = vpop.f32.mrf.mxu0
        %v1258 = vadd.f32 %v1184, %v1257
        %v1259 = vpop.f32.mrf.mxu0
        %v1260 = vadd.f32 %v1184, %v1259
        %1261 = vmatmul.bf16.gmra.mxu0 %v1232
        %v1262 = vpop.f32.mrf.mxu0
        %v1263 = vadd.f32 %v1184, %v1262
        %v1264 = vpop.f32.mrf.mxu0
        %v1265 = vadd.f32 %v1184, %v1264
        %1266 = vdwg.mxu0
        %v1267 = vlaneseq
        %v1268 = vand.u32 %v1267, 127
        %vm1269 = vcmp.lt.s32.totalorder %v1268, 8
        %v1270 = vsel %vm1269, 1, 0
        %vm1271 = vcmp.eq.s32.totalorder %v1270, 1
        %v1272 = vsel %vm1271, %v1248, 0.0
        %v1273 = vsel %vm1271, %v1250, 0.0
        %v1274 = vsel %vm1271, %v1253, 0.0
        %v1275 = vsel %vm1271, %v1255, 0.0
        %v1276 = vsel %vm1271, %v1258, 0.0
        %v1277 = vsel %vm1271, %v1260, 0.0
        %v1278 = vsel %vm1271, %v1263, 0.0
        %v1279 = vsel %vm1271, %v1265, 0.0
        %1280 = vadd.xlane.f32.xlu0 %v1272
        %v1281 = vpop.xlane.xlu0 %1280
        %1282 = vadd.xlane.f32.xlu0 %v1273
        %v1283 = vpop.xlane.xlu0 %1282
        %1284 = vadd.xlane.f32.xlu0 %v1274
        %v1285 = vpop.xlane.xlu0 %1284
        %1286 = vadd.xlane.f32.xlu0 %v1275
        %v1287 = vpop.xlane.xlu0 %1286
        %1288 = vadd.xlane.f32.xlu0 %v1276
        %v1289 = vpop.xlane.xlu0 %1288
        %1290 = vadd.xlane.f32.xlu0 %v1277
        %v1291 = vpop.xlane.xlu0 %1290
        %1292 = vadd.xlane.f32.xlu0 %v1278
        %v1293 = vpop.xlane.xlu0 %1292
        %1294 = vadd.xlane.f32.xlu0 %v1279
        %v1295 = vpop.xlane.xlu0 %1294
        %v1296 = vmul.f32 %v1281, 0.125
        %v1297 = vmul.f32 %v1283, 0.125
        %v1298 = vmul.f32 %v1285, 0.125
        %v1299 = vmul.f32 %v1287, 0.125
        %v1300 = vmul.f32 %v1289, 0.125
        %v1301 = vmul.f32 %v1291, 0.125
        %v1302 = vmul.f32 %v1293, 0.125
        %v1303 = vmul.f32 %v1295, 0.125
        %v1304 = vsub.f32 %v1248, %v1296
        %v1305 = vsub.f32 %v1250, %v1297
        %v1306 = vsub.f32 %v1253, %v1298
        %v1307 = vsub.f32 %v1255, %v1299
        %v1308 = vsub.f32 %v1258, %v1300
        %v1309 = vsub.f32 %v1260, %v1301
        %v1310 = vsub.f32 %v1263, %v1302
        %v1311 = vsub.f32 %v1265, %v1303
        %v1312 = vsel %vm1271, %v1304, 0.0
        %v1313 = vsel %vm1271, %v1305, 0.0
        %v1314 = vsel %vm1271, %v1306, 0.0
        %v1315 = vsel %vm1271, %v1307, 0.0
        %v1316 = vsel %vm1271, %v1308, 0.0
        %v1317 = vsel %vm1271, %v1309, 0.0
        %v1318 = vsel %vm1271, %v1310, 0.0
        %v1319 = vsel %vm1271, %v1311, 0.0
        %v1320 = vmul.f32 %v1312, %v1312
        %v1321 = vmul.f32 %v1313, %v1313
        %v1322 = vmul.f32 %v1314, %v1314
        %v1323 = vmul.f32 %v1315, %v1315
        %v1324 = vmul.f32 %v1316, %v1316
        %v1325 = vmul.f32 %v1317, %v1317
        %v1326 = vmul.f32 %v1318, %v1318
        %v1327 = vmul.f32 %v1319, %v1319
        %1328 = vadd.xlane.f32.xlu0 %v1320
        %v1329 = vpop.xlane.xlu0 %1328
        %1330 = vadd.xlane.f32.xlu0 %v1321
        %v1331 = vpop.xlane.xlu0 %1330
        %1332 = vadd.xlane.f32.xlu0 %v1322
        %v1333 = vpop.xlane.xlu0 %1332
        %1334 = vadd.xlane.f32.xlu0 %v1323
        %v1335 = vpop.xlane.xlu0 %1334
        %1336 = vadd.xlane.f32.xlu0 %v1324
        %v1337 = vpop.xlane.xlu0 %1336
        %1338 = vadd.xlane.f32.xlu0 %v1325
        %v1339 = vpop.xlane.xlu0 %1338
        %1340 = vadd.xlane.f32.xlu0 %v1326
        %v1341 = vpop.xlane.xlu0 %1340
        %1342 = vadd.xlane.f32.xlu0 %v1327
        %v1343 = vpop.xlane.xlu0 %1342
        %v1344 = vmul.f32 %v1329, 0.125
        %v1345 = vmul.f32 %v1331, 0.125
        %v1346 = vmul.f32 %v1333, 0.125
        %v1347 = vmul.f32 %v1335, 0.125
        %v1348 = vmul.f32 %v1337, 0.125
        %v1349 = vmul.f32 %v1339, 0.125
        %v1350 = vmul.f32 %v1341, 0.125
        %v1351 = vmul.f32 %v1343, 0.125
        %v1352 = vadd.f32 %v1344, 1e-05
        %v1353 = vadd.f32 %v1345, 1e-05
        %v1354 = vadd.f32 %v1346, 1e-05
        %v1355 = vadd.f32 %v1347, 1e-05
        %v1356 = vadd.f32 %v1348, 1e-05
        %v1357 = vadd.f32 %v1349, 1e-05
        %v1358 = vadd.f32 %v1350, 1e-05
        %v1359 = vadd.f32 %v1351, 1e-05
        %v1360 = vrsqrt.pop %v1352
        %v1361 = vmul.f32 %v1360, %v1352
        %v1362 = vmul.f32 %v1361, %v1360
        %v1363 = vmul.f32 0.5, %v1362
        %v1364 = vsub.f32 1.5, %v1363
        %v1365 = vmul.f32 %v1360, %v1364
        %vm1366 = vweird.f32 %v1352
        %vm1367 = vweird.f32 %v1360
        %vm1368 = vmor %vm1366, %vm1367
        %v1369 = vsel %vm1368, %v1360, %v1365
        %v1370 = vrsqrt.pop %v1353
        %v1371 = vmul.f32 %v1370, %v1353
        %v1372 = vmul.f32 %v1371, %v1370
        %v1373 = vmul.f32 0.5, %v1372
        %v1374 = vsub.f32 1.5, %v1373
        %v1375 = vmul.f32 %v1370, %v1374
        %vm1376 = vweird.f32 %v1353
        %vm1377 = vweird.f32 %v1370
        %vm1378 = vmor %vm1376, %vm1377
        %v1379 = vsel %vm1378, %v1370, %v1375
        %v1380 = vrsqrt.pop %v1354
        %v1381 = vmul.f32 %v1380, %v1354
        %v1382 = vmul.f32 %v1381, %v1380
        %v1383 = vmul.f32 0.5, %v1382
        %v1384 = vsub.f32 1.5, %v1383
        %v1385 = vmul.f32 %v1380, %v1384
        %vm1386 = vweird.f32 %v1354
        %vm1387 = vweird.f32 %v1380
        %vm1388 = vmor %vm1386, %vm1387
        %v1389 = vsel %vm1388, %v1380, %v1385
        %v1390 = vrsqrt.pop %v1355
        %v1391 = vmul.f32 %v1390, %v1355
        %v1392 = vmul.f32 %v1391, %v1390
        %v1393 = vmul.f32 0.5, %v1392
        %v1394 = vsub.f32 1.5, %v1393
        %v1395 = vmul.f32 %v1390, %v1394
        %vm1396 = vweird.f32 %v1355
        %vm1397 = vweird.f32 %v1390
        %vm1398 = vmor %vm1396, %vm1397
        %v1399 = vsel %vm1398, %v1390, %v1395
        %v1400 = vrsqrt.pop %v1356
        %v1401 = vmul.f32 %v1400, %v1356
        %v1402 = vmul.f32 %v1401, %v1400
        %v1403 = vmul.f32 0.5, %v1402
        %v1404 = vsub.f32 1.5, %v1403
        %v1405 = vmul.f32 %v1400, %v1404
        %vm1406 = vweird.f32 %v1356
        %vm1407 = vweird.f32 %v1400
        %vm1408 = vmor %vm1406, %vm1407
        %v1409 = vsel %vm1408, %v1400, %v1405
        %v1410 = vrsqrt.pop %v1357
        %v1411 = vmul.f32 %v1410, %v1357
        %v1412 = vmul.f32 %v1411, %v1410
        %v1413 = vmul.f32 0.5, %v1412
        %v1414 = vsub.f32 1.5, %v1413
        %v1415 = vmul.f32 %v1410, %v1414
        %vm1416 = vweird.f32 %v1357
        %vm1417 = vweird.f32 %v1410
        %vm1418 = vmor %vm1416, %vm1417
        %v1419 = vsel %vm1418, %v1410, %v1415
        %v1420 = vrsqrt.pop %v1358
        %v1421 = vmul.f32 %v1420, %v1358
        %v1422 = vmul.f32 %v1421, %v1420
        %v1423 = vmul.f32 0.5, %v1422
        %v1424 = vsub.f32 1.5, %v1423
        %v1425 = vmul.f32 %v1420, %v1424
        %vm1426 = vweird.f32 %v1358
        %vm1427 = vweird.f32 %v1420
        %vm1428 = vmor %vm1426, %vm1427
        %v1429 = vsel %vm1428, %v1420, %v1425
        %v1430 = vrsqrt.pop %v1359
        %v1431 = vmul.f32 %v1430, %v1359
        %v1432 = vmul.f32 %v1431, %v1430
        %v1433 = vmul.f32 0.5, %v1432
        %v1434 = vsub.f32 1.5, %v1433
        %v1435 = vmul.f32 %v1430, %v1434
        %vm1436 = vweird.f32 %v1359
        %vm1437 = vweird.f32 %v1430
        %vm1438 = vmor %vm1436, %vm1437
        %v1439 = vsel %vm1438, %v1430, %v1435
        %v1440 = vmul.f32 %v1312, %v1369
        %v1441 = vmul.f32 %v1313, %v1379
        %v1442 = vmul.f32 %v1314, %v1389
        %v1443 = vmul.f32 %v1315, %v1399
        %v1444 = vmul.f32 %v1316, %v1409
        %v1445 = vmul.f32 %v1317, %v1419
        %v1446 = vmul.f32 %v1318, %v1429
        %v1447 = vmul.f32 %v1319, %v1439
        %v1448 = vld [vmem:[%s6] sm:$0x1]
        %v1450 = vperm.slane %v1448, 0
        %v1452 = vmul.f32 %v1440, %v1450
        %v1453 = vmul.f32 %v1441, %v1450
        %v1454 = vmul.f32 %v1442, %v1450
        %v1455 = vmul.f32 %v1443, %v1450
        %v1456 = vmul.f32 %v1444, %v1450
        %v1457 = vmul.f32 %v1445, %v1450
        %v1458 = vmul.f32 %v1446, %v1450
        %v1459 = vmul.f32 %v1447, %v1450
        %v1460 = vld [vmem:[%s7] sm:$0x1]
        %v1462 = vperm.slane %v1460, 0
        %v1464 = vadd.f32 %v1452, %v1462
        %v1465 = vadd.f32 %v1453, %v1462
        %v1466 = vadd.f32 %v1454, %v1462
        %v1467 = vadd.f32 %v1455, %v1462
        %v1468 = vadd.f32 %v1456, %v1462
        %v1469 = vadd.f32 %v1457, %v1462
        %v1470 = vadd.f32 %v1458, %v1462
        %v1471 = vadd.f32 %v1459, %v1462
        %1472 = vst [vmem:[%s401] sm:$0xff] %v1464
        %1473 = vst [vmem:[%s401 + $0x8] sm:$0xff] %v1465
        %1474 = vst [vmem:[%s401 + $0x10] sm:$0xff] %v1466
        %1475 = vst [vmem:[%s401 + $0x18] sm:$0xff] %v1467
        %1476 = vst [vmem:[%s401 + $0x20] sm:$0xff] %v1468
        %1477 = vst [vmem:[%s401 + $0x28] sm:$0xff] %v1469
        %1478 = vst [vmem:[%s401 + $0x30] sm:$0xff] %v1470
        %1479 = vst [vmem:[%s401 + $0x38] sm:$0xff] %v1471
        %s1480 = sand.u32 %s240, 1
        %s1481 = scalar_lea.sflag [#allocation4], %s1480
        %s1482 = sand.u32 %s240, 1
        %s1483 = smul.addr %s1482, 64
        %s1484 = scalar_lea.vmem [#allocation3], %s1483
        // Predicated region
        $region53: #{tpu_custom_call.1} parent=51 // pred_check
          %p1485 = pneg %p250
        $region54: #{tpu_custom_call.1} parent=51 // pred_check_branch
          %1487 = sbr.rel (%p1485) target = $region56
        $region55: #{tpu_custom_call.1} parent=51 // pred_region
          %s1488 = smul.u32 8, %s27
          %1490 = vsyncadd %s1481, 0
          %s1491 = smul.addr %s26, 8
          %s1492 = sadd.s32 %s1488, %s1491
          %s1493 = smul.addr %s1492, 8
          %s1494 = scalar_lea.hbm %s8, %s1493
          %s1495 = sshll.u32 %s1484, 4
          %s1496 = int_to_ptr.vmem [resolvable:$true] %s1495
          %s1497 = sshll.u32 %s1494, 4
          %s1498 = int_to_ptr.hbm [resolvable:$true] %s1497
          %1503 = dma.vmem_to_hbm [thread:$0]  %s1496, 1024, %s1498, %s1481, 128, 128, 8
        $region56: #{tpu_custom_call.1} parent=51 // pred_fallthru
          _
      $region52: #{tpu_custom_call.1} parent=5 // pred_fallthru
        _
      %p1504 = scmp.le.s32.totalorder 2, %s17
      // Predicated region
      $region57: #{tpu_custom_call.1} parent=5 // pred_check
        %p1505 = pneg %p1504
      $region58: #{tpu_custom_call.1} parent=5 // pred_check_branch
        %1507 = sbr.rel (%p1505) target = $region60
      $region59: #{tpu_custom_call.1} parent=5 // pred_region
        %s1508 = ssub.s32 %s17, 2
        // Predicated region
        $region61: #{tpu_custom_call.1} parent=59 // pred_check
          %p1509 = pneg %p256
        $region62: #{tpu_custom_call.1} parent=59 // pred_check_branch
          %1511 = sbr.rel (%p1509) target = $region64
        $region63: #{tpu_custom_call.1} parent=59 // pred_region
          %s1512 = sand.u32 %s241, 1
          %s1513 = scalar_lea.sflag [#allocation4], %s1512
          %s1514 = sand.u32 %s241, 1
          %s1515 = smul.addr %s1514, 64
          %s1516 = scalar_lea.vmem [#allocation3], %s1515
          %1518 = dma.done %s1513, 1024
        $region64: #{tpu_custom_call.1} parent=59 // pred_fallthru
          _
      $region60: #{tpu_custom_call.1} parent=5 // pred_fallthru
        _
    $region6: #{tpu_custom_call.1} parent=1 // loop_footer
      %s21 = sadd.s32 1, %s17
    $region7: #{tpu_custom_call.1} parent=1 // loop_footer_branch
      %16 = sbr.rel target = $region3
    $region8: #{tpu_custom_call.1} parent=1 // loop_exit
      _
    %1519 = vsyncpa [#allocation4], 1
    %s1520 = scalar_lea.sflag [#allocation4], 1
    %1521 = vsyncpa %s1520, 1

</llo_original>
